<compile_context>
chip_gen: v7x
topology: tpu7x:2x2x1
jax: 0.10.0
libtpu: 0.0.40
codegen_flags: <defaults>
</compile_context>

<pallas_src>
import jax
import jax.numpy as jnp
from jax import lax
from jax.experimental import pallas as pl
from jax.experimental.pallas import tpu as pltpu


# ---------------------------------------------------------------------------
# Fused Bottleneck kernel (one batch image per grid step)
# ---------------------------------------------------------------------------

def bottleneck_kernel(x_ref, w1_ref, b1_ref, w2_ref, b2_ref, w3_ref, b3_ref,
                      o_ref, slab_ref, patch_ref):
    """x_ref:  (1, H, W, Cin)   f32   (also the residual identity)
       w1_ref: (Cin, Cmid)      bf16  (BN1 scale folded in)
       w2_ref: (9*Cmid, Cmid)   bf16  (im2col taps, BN2 scale folded in)
       w3_ref: (Cmid, Cexp)     bf16  (BN3 scale folded in)
       b*_ref: (1, C)           f32   folded BN biases
       o_ref:  (1, H, W, Cexp)  f32
       slab_ref:  VMEM (H+2, W+2, Cmid) f32  zero-padded conv1 output (halo)
       patch_ref: VMEM (H*W, 9*Cmid)    bf16 im2col patch for the 3x3 conv
    """
    _, H, W, Cin = x_ref.shape
    Cmid = w1_ref.shape[1]
    Cexp = w3_ref.shape[1]

    x = x_ref[0]                          # (H, W, Cin) f32
    x2d = x.reshape(H * W, Cin)           # identity + conv1 input (read once)

    # ---- conv1 (1x1) + BN1 + ReLU  (bf16 matmul, f32 accumulate/epilogue) ----
    y1 = jnp.dot(x2d.astype(jnp.bfloat16), w1_ref[...],
                 preferred_element_type=jnp.float32)
    y1 = jnp.maximum(y1 + b1_ref[...], 0.0)             # (H*W, Cmid) f32
    y1_bf16 = y1.astype(jnp.bfloat16)                    # single f32->bf16 cast

    # ---- zero only the 1-px halo border of the slab (interior overwritten) --
    zero_row = jnp.zeros((1, W + 2, Cmid), jnp.float32)
    zero_col = jnp.zeros((H, 1, Cmid), jnp.float32)
    slab_ref[0:1, :, :] = zero_row
    slab_ref[H + 1:H + 2, :, :] = zero_row
    slab_ref[1:H + 1, 0:1, :] = zero_col
    slab_ref[1:H + 1, W + 1:W + 2, :] = zero_col
    slab_ref[1:H + 1, 1:W + 1, :] = y1.reshape(H, W, Cmid)

    # ---- im2col: 8 shifted windows from the slab; center tap from registers --
    for kh in range(3):
        for kw in range(3):
            t = kh * 3 + kw
            if kh == 1 and kw == 1:
                patch_ref[:, t * Cmid:(t + 1) * Cmid] = y1_bf16
            else:
                patch_ref[:, t * Cmid:(t + 1) * Cmid] = (
                    slab_ref[kh:kh + H, kw:kw + W, :]
                    .reshape(H * W, Cmid).astype(jnp.bfloat16))

    # ---- conv2 (3x3) + BN2 + ReLU as ONE deep-K matmul (K = 9*Cmid) ----
    y2 = jnp.dot(patch_ref[...], w2_ref[...],
                 preferred_element_type=jnp.float32)
    y2 = jnp.maximum(y2 + b2_ref[...], 0.0)              # (H*W, Cmid) f32

    # ---- conv3 (1x1) + BN3 + residual add + ReLU ----
    y3 = jnp.dot(y2.astype(jnp.bfloat16), w3_ref[...],
                 preferred_element_type=jnp.float32)
    y3 = y3 + b3_ref[...] + x2d                          # f32 residual add
    o_ref[0] = jnp.maximum(y3, 0.0).reshape(H, W, Cexp)


# ---------------------------------------------------------------------------
# Wrapper: grid over batch ("parallel"), all intermediates stay in VMEM
# ---------------------------------------------------------------------------

def bottleneck_forward(x_nchw, params, stride=1):
    # downsample is None: identity path is the raw input, which requires
    # in_channels == out_channels * expansion and stride == 1.
    # TODO(synk): downsample branch (1x1 strided conv + BN) and stride>1 path
    #             (strided output index_map) not instantiated here.
    assert stride == 1, "stride>1 requires the downsample branch"

    x = jnp.transpose(x_nchw, (0, 2, 3, 1))   # NCHW -> NHWC
    N, H, W, Cin = x.shape
    Cmid = params["w1"].shape[1]
    Cexp = params["w3"].shape[1]
    assert Cexp == Cin, "downsample=None requires in_channels == out*expansion"

    grid_spec = pltpu.PrefetchScalarGridSpec(
        num_scalar_prefetch=0,
        grid=(N,),
        in_specs=[
            pl.BlockSpec((1, H, W, Cin), lambda n: (n, 0, 0, 0)),   # x / identity
            pl.BlockSpec((Cin, Cmid), lambda n: (0, 0)),            # w1 (folded)
            pl.BlockSpec((1, Cmid), lambda n: (0, 0)),              # b1
            pl.BlockSpec((9 * Cmid, Cmid), lambda n: (0, 0)),       # w2 im2col
            pl.BlockSpec((1, Cmid), lambda n: (0, 0)),              # b2
            pl.BlockSpec((Cmid, Cexp), lambda n: (0, 0)),           # w3 (folded)
            pl.BlockSpec((1, Cexp), lambda n: (0, 0)),              # b3
        ],
        out_specs=pl.BlockSpec((1, H, W, Cexp), lambda n: (n, 0, 0, 0)),
        scratch_shapes=[
            pltpu.VMEM((H + 2, W + 2, Cmid), jnp.float32),   # padded conv1 out
            pltpu.VMEM((H * W, 9 * Cmid), jnp.bfloat16),     # im2col patch
        ],
    )

    # Advisory cost hint for XLA's scheduler around the custom call.
    flops = 2 * N * H * W * (Cin * Cmid + 9 * Cmid * Cmid + Cmid * Cexp)
    bytes_accessed = (N * H * W * Cin * 4 + N * H * W * Cexp * 4
                      + (Cin * Cmid + 9 * Cmid * Cmid + Cmid * Cexp) * 2
                      + (2 * Cmid + Cexp) * 4)
    cost = pl.CostEstimate(flops=int(flops), transcendentals=0,
                           bytes_accessed=int(bytes_accessed))

    out = pl.pallas_call(
        bottleneck_kernel,
        out_shape=jax.ShapeDtypeStruct((N, H, W, Cexp), jnp.float32),
        grid_spec=grid_spec,
        compiler_params=pltpu.CompilerParams(
            dimension_semantics=("parallel",),       # shard batch across TCs
            vmem_limit_bytes=48 * 1024 * 1024,       # headroom for v7x 64 MiB
        ),
        cost_estimate=cost,
    )(x, params["w1"], params["b1"], params["w2"], params["b2"],
      params["w3"], params["b3"])

    return jnp.transpose(out, (0, 3, 1, 2))   # NHWC -> NCHW


# ---------------------------------------------------------------------------
# Parameter setup: BN folding (scale into weights, bias kept) + bf16 weights
# ---------------------------------------------------------------------------

def fold_bn(gamma, beta, mean, var, eps=1e-5):
    scale = gamma / jnp.sqrt(var + eps)
    bias = beta - mean * scale
    return scale, bias


def make_params(key, in_channels, out_channels):
    expansion = 4
    cexp = out_channels * expansion
    ks = iter(jax.random.split(key, 16))

    def conv_w(cout, cin, k):
        return 0.1 * jax.random.normal(next(ks), (cout, cin, k, k), jnp.float32)

    def bn_params(c):
        gamma = 1.0 + 0.1 * jax.random.normal(next(ks), (c,), jnp.float32)
        beta = 0.1 * jax.random.normal(next(ks), (c,), jnp.float32)
        mean = 0.1 * jax.random.normal(next(ks), (c,), jnp.float32)
        var = 1.0 + 0.1 * jnp.abs(jax.random.normal(next(ks), (c,), jnp.float32))
        return gamma, beta, mean, var

    # PyTorch conv weights are (Cout, Cin, kH, kW)
    w1_pt = conv_w(out_channels, in_channels, 1)
    w2_pt = conv_w(out_channels, out_channels, 3)
    w3_pt = conv_w(cexp, out_channels, 1)

    s1, b1 = fold_bn(*bn_params(out_channels))
    s2, b2 = fold_bn(*bn_params(out_channels))
    s3, b3 = fold_bn(*bn_params(cexp))

    # Fold BN scale into the conv weights (eval-mode BN), cast to bf16 once.
    w1 = (w1_pt[:, :, 0, 0].T * s1[None, :]).astype(jnp.bfloat16)       # (Cin, Cmid)
    w2_hwio = jnp.transpose(w2_pt, (2, 3, 1, 0)) * s2[None, None, None, :]  # (3,3,Ci,Co)
    w2 = w2_hwio.reshape(9 * out_channels, out_channels).astype(jnp.bfloat16)
    w3 = (w3_pt[:, :, 0, 0].T * s3[None, :]).astype(jnp.bfloat16)       # (Cmid, Cexp)

    return {
        "w1": w1, "b1": b1.reshape(1, -1).astype(jnp.float32),
        "w2": w2, "b2": b2.reshape(1, -1).astype(jnp.float32),
        "w3": w3, "b3": b3.reshape(1, -1).astype(jnp.float32),
        # HWIO bf16 folded weights for the independent XLA reference path
        "_w2_hwio_bf16": w2_hwio.astype(jnp.bfloat16),
    }


# ---------------------------------------------------------------------------
# Pure-JAX reference (same folded bf16 weights, f32 accumulation/epilogue)
# ---------------------------------------------------------------------------

def bottleneck_reference(x_nchw, params, stride=1):
    x = jnp.transpose(x_nchw, (0, 2, 3, 1))
    identity = x

    def conv1x1(z, w):  # w: (Cin, Cout) bf16
        return jnp.einsum("nhwc,cd->nhwd", z.astype(jnp.bfloat16), w,
                          preferred_element_type=jnp.float32)

    out = jnp.maximum(conv1x1(x, params["w1"]) + params["b1"], 0.0)
    out = lax.conv_general_dilated(
        out.astype(jnp.bfloat16), params["_w2_hwio_bf16"],
        window_strides=(stride, stride), padding=((1, 1), (1, 1)),
        dimension_numbers=("NHWC", "HWIO", "NHWC"),
        preferred_element_type=jnp.float32)
    out = jnp.maximum(out + params["b2"], 0.0)
    out = conv1x1(out, params["w3"]) + params["b3"]
    out = jnp.maximum(out + identity, 0.0)
    return jnp.transpose(out, (0, 3, 1, 2))


if __name__ == "__main__":
    key = jax.random.PRNGKey(0)
    k_x, k_p = jax.random.split(key)

    # Small shapes consistent with the module: in_channels == out_channels * 4,
    # stride = 1, downsample = None.
    N, out_channels, H, W = 2, 8, 16, 16
    Cin = out_channels * 4
    stride = 1

    x = jax.random.normal(k_x, (N, Cin, H, W), jnp.float32)
    params = make_params(k_p, Cin, out_channels)

    fwd = jax.jit(bottleneck_forward)
    out = jax.block_until_ready(fwd(x, params))

    ref = bottleneck_reference(x, params, stride=stride)
    assert out.shape == (N, Cin, H, W)
    max_err = float(jnp.max(jnp.abs(out - ref)))
    assert jnp.allclose(out, ref, atol=2e-3, rtol=2e-3), (
        f"mismatch vs JAX reference (max abs err {max_err})")

    print("KERNEL_OK")
</pallas_src>

<mosaic_0001>
module attributes {stable_mosaic.version = 11 : i64} {
  func.func @bottleneck_kernel(%arg0: i32, %arg1: memref<1x16x16x32xf32, #tpu.memory_space<vmem>>, %arg2: memref<32x8xbf16, #tpu.memory_space<vmem>>, %arg3: memref<1x8xf32, #tpu.memory_space<vmem>>, %arg4: memref<72x8xbf16, #tpu.memory_space<vmem>>, %arg5: memref<1x8xf32, #tpu.memory_space<vmem>>, %arg6: memref<8x32xbf16, #tpu.memory_space<vmem>>, %arg7: memref<1x32xf32, #tpu.memory_space<vmem>>, %arg8: memref<1x16x16x32xf32, #tpu.memory_space<vmem>>, %arg9: memref<18x18x8xf32, #tpu.memory_space<vmem>>, %arg10: memref<256x72xbf16, #tpu.memory_space<vmem>>) attributes {dimension_semantics = [#tpu.dimension_semantics<parallel>], iteration_bounds = array<i64: 2>, scalar_prefetch = 0 : i64, scratch_operands = 2 : i64, tpu.core_type = #tpu.core_type<tc>, window_params = [{transform_indices = @transform_0, window_bounds = array<i64: 1, 16, 16, 32>}, {pipeline_mode = #tpu.pipeline_mode<synchronous>, transform_indices = @transform_1, window_bounds = array<i64: 32, 8>}, {pipeline_mode = #tpu.pipeline_mode<synchronous>, transform_indices = @transform_2, window_bounds = array<i64: 1, 8>}, {pipeline_mode = #tpu.pipeline_mode<synchronous>, transform_indices = @transform_3, window_bounds = array<i64: 72, 8>}, {pipeline_mode = #tpu.pipeline_mode<synchronous>, transform_indices = @transform_4, window_bounds = array<i64: 1, 8>}, {pipeline_mode = #tpu.pipeline_mode<synchronous>, transform_indices = @transform_5, window_bounds = array<i64: 8, 32>}, {pipeline_mode = #tpu.pipeline_mode<synchronous>, transform_indices = @transform_6, window_bounds = array<i64: 1, 32>}, {transform_indices = @transform_7, window_bounds = array<i64: 1, 16, 16, 32>}]} {
    %c0 = arith.constant 0 : index
    %c0_0 = arith.constant 0 : index
    %c0_1 = arith.constant 0 : index
    %c0_2 = arith.constant 0 : index
    %0 = vector.load %arg1[%c0, %c0_0, %c0_1, %c0_2] : memref<1x16x16x32xf32, #tpu.memory_space<vmem>>, vector<1x16x16x32xf32>
    %1 = vector.shape_cast %0 : vector<1x16x16x32xf32> to vector<16x16x32xf32>
    %2 = vector.shape_cast %1 : vector<16x16x32xf32> to vector<256x32xf32>
    %3 = arith.truncf %2 : vector<256x32xf32> to vector<256x32xbf16>
    %c0_3 = arith.constant 0 : index
    %c0_4 = arith.constant 0 : index
    %4 = vector.load %arg2[%c0_3, %c0_4] : memref<32x8xbf16, #tpu.memory_space<vmem>>, vector<32x8xbf16>
    %cst = arith.constant dense<0.000000e+00> : vector<256x8xf32>
    %5 = tpu.matmul %3, %4, %cst {dimension_numbers = #tpu.dot_dimension_numbers<[1], [0], [0], [1], [0, 0, 1, 1], [], []>} : vector<256x32xbf16>, vector<32x8xbf16>, vector<256x8xf32> -> vector<256x8xf32>
    %c0_5 = arith.constant 0 : index
    %c0_6 = arith.constant 0 : index
    %6 = vector.load %arg3[%c0_5, %c0_6] : memref<1x8xf32, #tpu.memory_space<vmem>>, vector<1x8xf32>
    %7 = vector.broadcast %6 : vector<1x8xf32> to vector<256x8xf32>
    %8 = arith.addf %5, %7 : vector<256x8xf32>
    %cst_7 = arith.constant 0.000000e+00 : f32
    %9 = vector.broadcast %cst_7 : f32 to vector<256x8xf32>
    %10 = arith.maximumf %8, %9 : vector<256x8xf32>
    %11 = arith.truncf %10 : vector<256x8xf32> to vector<256x8xbf16>
    %cst_8 = arith.constant 0.000000e+00 : f32
    %12 = vector.broadcast %cst_8 : f32 to vector<1x18x8xf32>
    %cst_9 = arith.constant 0.000000e+00 : f32
    %13 = vector.broadcast %cst_9 : f32 to vector<16x1x8xf32>
    %c0_10 = arith.constant 0 : index
    %c0_11 = arith.constant 0 : index
    %c0_12 = arith.constant 0 : index
    %14 = vector.load %arg9[%c0_10, %c0_11, %c0_12] : memref<18x18x8xf32, #tpu.memory_space<vmem>>, vector<1x18x8xf32>
    tpu.vector_store %arg9[%c0_10, %c0_11, %c0_12], %12 {strides = array<i32>} : memref<18x18x8xf32, #tpu.memory_space<vmem>>, vector<1x18x8xf32>,
    %c17 = arith.constant 17 : index
    %c0_13 = arith.constant 0 : index
    %c0_14 = arith.constant 0 : index
    %15 = vector.load %arg9[%c17, %c0_13, %c0_14] : memref<18x18x8xf32, #tpu.memory_space<vmem>>, vector<1x18x8xf32>
    tpu.vector_store %arg9[%c17, %c0_13, %c0_14], %12 {strides = array<i32>} : memref<18x18x8xf32, #tpu.memory_space<vmem>>, vector<1x18x8xf32>,
    %c1 = arith.constant 1 : index
    %c0_15 = arith.constant 0 : index
    %c0_16 = arith.constant 0 : index
    %16 = vector.load %arg9[%c1, %c0_15, %c0_16] : memref<18x18x8xf32, #tpu.memory_space<vmem>>, vector<16x1x8xf32>
    tpu.vector_store %arg9[%c1, %c0_15, %c0_16], %13 {strides = array<i32>} : memref<18x18x8xf32, #tpu.memory_space<vmem>>, vector<16x1x8xf32>,
    %c1_17 = arith.constant 1 : index
    %c17_18 = arith.constant 17 : index
    %c0_19 = arith.constant 0 : index
    %17 = vector.load %arg9[%c1_17, %c17_18, %c0_19] : memref<18x18x8xf32, #tpu.memory_space<vmem>>, vector<16x1x8xf32>
    tpu.vector_store %arg9[%c1_17, %c17_18, %c0_19], %13 {strides = array<i32>} : memref<18x18x8xf32, #tpu.memory_space<vmem>>, vector<16x1x8xf32>,
    %18 = vector.shape_cast %10 : vector<256x8xf32> to vector<16x16x8xf32>
    %c1_20 = arith.constant 1 : index
    %c1_21 = arith.constant 1 : index
    %c0_22 = arith.constant 0 : index
    %19 = vector.load %arg9[%c1_20, %c1_21, %c0_22] : memref<18x18x8xf32, #tpu.memory_space<vmem>>, vector<16x16x8xf32>
    tpu.vector_store %arg9[%c1_20, %c1_21, %c0_22], %18 {strides = array<i32>} : memref<18x18x8xf32, #tpu.memory_space<vmem>>, vector<16x16x8xf32>,
    %c0_23 = arith.constant 0 : index
    %c0_24 = arith.constant 0 : index
    %c0_25 = arith.constant 0 : index
    %20 = vector.load %arg9[%c0_23, %c0_24, %c0_25] : memref<18x18x8xf32, #tpu.memory_space<vmem>>, vector<16x16x8xf32>
    %21 = vector.shape_cast %20 : vector<16x16x8xf32> to vector<256x8xf32>
    %22 = arith.truncf %21 : vector<256x8xf32> to vector<256x8xbf16>
    %c0_26 = arith.constant 0 : index
    %c0_27 = arith.constant 0 : index
    %23 = vector.load %arg10[%c0_26, %c0_27] : memref<256x72xbf16, #tpu.memory_space<vmem>>, vector<256x8xbf16>
    tpu.vector_store %arg10[%c0_26, %c0_27], %22 {strides = array<i32>} : memref<256x72xbf16, #tpu.memory_space<vmem>>, vector<256x8xbf16>,
    %c0_28 = arith.constant 0 : index
    %c1_29 = arith.constant 1 : index
    %c0_30 = arith.constant 0 : index
    %24 = vector.load %arg9[%c0_28, %c1_29, %c0_30] : memref<18x18x8xf32, #tpu.memory_space<vmem>>, vector<16x16x8xf32>
    %25 = vector.shape_cast %24 : vector<16x16x8xf32> to vector<256x8xf32>
    %26 = arith.truncf %25 : vector<256x8xf32> to vector<256x8xbf16>
    %c0_31 = arith.constant 0 : index
    %c8 = arith.constant 8 : index
    %27 = vector.load %arg10[%c0_31, %c8] : memref<256x72xbf16, #tpu.memory_space<vmem>>, vector<256x8xbf16>
    tpu.vector_store %arg10[%c0_31, %c8], %26 {strides = array<i32>} : memref<256x72xbf16, #tpu.memory_space<vmem>>, vector<256x8xbf16>,
    %c0_32 = arith.constant 0 : index
    %c2 = arith.constant 2 : index
    %c0_33 = arith.constant 0 : index
    %28 = vector.load %arg9[%c0_32, %c2, %c0_33] : memref<18x18x8xf32, #tpu.memory_space<vmem>>, vector<16x16x8xf32>
    %29 = vector.shape_cast %28 : vector<16x16x8xf32> to vector<256x8xf32>
    %30 = arith.truncf %29 : vector<256x8xf32> to vector<256x8xbf16>
    %c0_34 = arith.constant 0 : index
    %c16 = arith.constant 16 : index
    %31 = vector.load %arg10[%c0_34, %c16] : memref<256x72xbf16, #tpu.memory_space<vmem>>, vector<256x8xbf16>
    tpu.vector_store %arg10[%c0_34, %c16], %30 {strides = array<i32>} : memref<256x72xbf16, #tpu.memory_space<vmem>>, vector<256x8xbf16>,
    %c1_35 = arith.constant 1 : index
    %c0_36 = arith.constant 0 : index
    %c0_37 = arith.constant 0 : index
    %32 = vector.load %arg9[%c1_35, %c0_36, %c0_37] : memref<18x18x8xf32, #tpu.memory_space<vmem>>, vector<16x16x8xf32>
    %33 = vector.shape_cast %32 : vector<16x16x8xf32> to vector<256x8xf32>
    %34 = arith.truncf %33 : vector<256x8xf32> to vector<256x8xbf16>
    %c0_38 = arith.constant 0 : index
    %c24 = arith.constant 24 : index
    %35 = vector.load %arg10[%c0_38, %c24] : memref<256x72xbf16, #tpu.memory_space<vmem>>, vector<256x8xbf16>
    tpu.vector_store %arg10[%c0_38, %c24], %34 {strides = array<i32>} : memref<256x72xbf16, #tpu.memory_space<vmem>>, vector<256x8xbf16>,
    %c0_39 = arith.constant 0 : index
    %c32 = arith.constant 32 : index
    %36 = vector.load %arg10[%c0_39, %c32] : memref<256x72xbf16, #tpu.memory_space<vmem>>, vector<256x8xbf16>
    tpu.vector_store %arg10[%c0_39, %c32], %11 {strides = array<i32>} : memref<256x72xbf16, #tpu.memory_space<vmem>>, vector<256x8xbf16>,
    %c1_40 = arith.constant 1 : index
    %c2_41 = arith.constant 2 : index
    %c0_42 = arith.constant 0 : index
    %37 = vector.load %arg9[%c1_40, %c2_41, %c0_42] : memref<18x18x8xf32, #tpu.memory_space<vmem>>, vector<16x16x8xf32>
    %38 = vector.shape_cast %37 : vector<16x16x8xf32> to vector<256x8xf32>
    %39 = arith.truncf %38 : vector<256x8xf32> to vector<256x8xbf16>
    %c0_43 = arith.constant 0 : index
    %c40 = arith.constant 40 : index
    %40 = vector.load %arg10[%c0_43, %c40] : memref<256x72xbf16, #tpu.memory_space<vmem>>, vector<256x8xbf16>
    tpu.vector_store %arg10[%c0_43, %c40], %39 {strides = array<i32>} : memref<256x72xbf16, #tpu.memory_space<vmem>>, vector<256x8xbf16>,
    %c2_44 = arith.constant 2 : index
    %c0_45 = arith.constant 0 : index
    %c0_46 = arith.constant 0 : index
    %41 = vector.load %arg9[%c2_44, %c0_45, %c0_46] : memref<18x18x8xf32, #tpu.memory_space<vmem>>, vector<16x16x8xf32>
    %42 = vector.shape_cast %41 : vector<16x16x8xf32> to vector<256x8xf32>
    %43 = arith.truncf %42 : vector<256x8xf32> to vector<256x8xbf16>
    %c0_47 = arith.constant 0 : index
    %c48 = arith.constant 48 : index
    %44 = vector.load %arg10[%c0_47, %c48] : memref<256x72xbf16, #tpu.memory_space<vmem>>, vector<256x8xbf16>
    tpu.vector_store %arg10[%c0_47, %c48], %43 {strides = array<i32>} : memref<256x72xbf16, #tpu.memory_space<vmem>>, vector<256x8xbf16>,
    %c2_48 = arith.constant 2 : index
    %c1_49 = arith.constant 1 : index
    %c0_50 = arith.constant 0 : index
    %45 = vector.load %arg9[%c2_48, %c1_49, %c0_50] : memref<18x18x8xf32, #tpu.memory_space<vmem>>, vector<16x16x8xf32>
    %46 = vector.shape_cast %45 : vector<16x16x8xf32> to vector<256x8xf32>
    %47 = arith.truncf %46 : vector<256x8xf32> to vector<256x8xbf16>
    %c0_51 = arith.constant 0 : index
    %c56 = arith.constant 56 : index
    %48 = vector.load %arg10[%c0_51, %c56] : memref<256x72xbf16, #tpu.memory_space<vmem>>, vector<256x8xbf16>
    tpu.vector_store %arg10[%c0_51, %c56], %47 {strides = array<i32>} : memref<256x72xbf16, #tpu.memory_space<vmem>>, vector<256x8xbf16>,
    %c2_52 = arith.constant 2 : index
    %c2_53 = arith.constant 2 : index
    %c0_54 = arith.constant 0 : index
    %49 = vector.load %arg9[%c2_52, %c2_53, %c0_54] : memref<18x18x8xf32, #tpu.memory_space<vmem>>, vector<16x16x8xf32>
    %50 = vector.shape_cast %49 : vector<16x16x8xf32> to vector<256x8xf32>
    %51 = arith.truncf %50 : vector<256x8xf32> to vector<256x8xbf16>
    %c0_55 = arith.constant 0 : index
    %c64 = arith.constant 64 : index
    %52 = vector.load %arg10[%c0_55, %c64] : memref<256x72xbf16, #tpu.memory_space<vmem>>, vector<256x8xbf16>
    tpu.vector_store %arg10[%c0_55, %c64], %51 {strides = array<i32>} : memref<256x72xbf16, #tpu.memory_space<vmem>>, vector<256x8xbf16>,
    %c0_56 = arith.constant 0 : index
    %c0_57 = arith.constant 0 : index
    %53 = vector.load %arg10[%c0_56, %c0_57] : memref<256x72xbf16, #tpu.memory_space<vmem>>, vector<256x72xbf16>
    %c0_58 = arith.constant 0 : index
    %c0_59 = arith.constant 0 : index
    %54 = vector.load %arg4[%c0_58, %c0_59] : memref<72x8xbf16, #tpu.memory_space<vmem>>, vector<72x8xbf16>
    %cst_60 = arith.constant dense<0.000000e+00> : vector<256x8xf32>
    %55 = tpu.matmul %53, %54, %cst_60 {dimension_numbers = #tpu.dot_dimension_numbers<[1], [0], [0], [1], [0, 0, 1, 1], [], []>} : vector<256x72xbf16>, vector<72x8xbf16>, vector<256x8xf32> -> vector<256x8xf32>
    %c0_61 = arith.constant 0 : index
    %c0_62 = arith.constant 0 : index
    %56 = vector.load %arg5[%c0_61, %c0_62] : memref<1x8xf32, #tpu.memory_space<vmem>>, vector<1x8xf32>
    %57 = vector.broadcast %56 : vector<1x8xf32> to vector<256x8xf32>
    %58 = arith.addf %55, %57 : vector<256x8xf32>
    %cst_63 = arith.constant 0.000000e+00 : f32
    %59 = vector.broadcast %cst_63 : f32 to vector<256x8xf32>
    %60 = arith.maximumf %58, %59 : vector<256x8xf32>
    %61 = arith.truncf %60 : vector<256x8xf32> to vector<256x8xbf16>
    %c0_64 = arith.constant 0 : index
    %c0_65 = arith.constant 0 : index
    %62 = vector.load %arg6[%c0_64, %c0_65] : memref<8x32xbf16, #tpu.memory_space<vmem>>, vector<8x32xbf16>
    %cst_66 = arith.constant dense<0.000000e+00> : vector<256x32xf32>
    %63 = tpu.matmul %61, %62, %cst_66 {dimension_numbers = #tpu.dot_dimension_numbers<[1], [0], [0], [1], [0, 0, 1, 1], [], []>} : vector<256x8xbf16>, vector<8x32xbf16>, vector<256x32xf32> -> vector<256x32xf32>
    %c0_67 = arith.constant 0 : index
    %c0_68 = arith.constant 0 : index
    %64 = vector.load %arg7[%c0_67, %c0_68] : memref<1x32xf32, #tpu.memory_space<vmem>>, vector<1x32xf32>
    %65 = vector.broadcast %64 : vector<1x32xf32> to vector<256x32xf32>
    %66 = arith.addf %63, %65 : vector<256x32xf32>
    %67 = arith.addf %66, %2 : vector<256x32xf32>
    %cst_69 = arith.constant 0.000000e+00 : f32
    %68 = vector.broadcast %cst_69 : f32 to vector<256x32xf32>
    %69 = arith.maximumf %67, %68 : vector<256x32xf32>
    %70 = vector.shape_cast %69 : vector<256x32xf32> to vector<16x16x32xf32>
    %c0_70 = arith.constant 0 : index
    %c0_71 = arith.constant 0 : index
    %c0_72 = arith.constant 0 : index
    %c0_73 = arith.constant 0 : index
    %71 = vector.load %arg8[%c0_70, %c0_71, %c0_72, %c0_73] : memref<1x16x16x32xf32, #tpu.memory_space<vmem>>, vector<1x16x16x32xf32>
    %72 = vector.shape_cast %71 : vector<1x16x16x32xf32> to vector<16x16x32xf32>
    %73 = vector.shape_cast %70 : vector<16x16x32xf32> to vector<1x16x16x32xf32>
    tpu.vector_store %arg8[%c0_70, %c0_71, %c0_72, %c0_73], %73 {strides = array<i32>} : memref<1x16x16x32xf32, #tpu.memory_space<vmem>>, vector<1x16x16x32xf32>,
    return
  }
  func.func @transform_0(%arg0: i32) -> (i32, i32, i32, i32) {
    %c0_i32 = arith.constant 0 : i32
    %c0_i32_0 = arith.constant 0 : i32
    %c0_i32_1 = arith.constant 0 : i32
    %c0_i32_2 = arith.constant 0 : i32
    return %arg0, %c0_i32, %c0_i32_0, %c0_i32_1 : i32, i32, i32, i32
  }
  func.func @transform_1(%arg0: i32) -> (i32, i32) {
    %c0_i32 = arith.constant 0 : i32
    %c0_i32_0 = arith.constant 0 : i32
    %c0_i32_1 = arith.constant 0 : i32
    return %c0_i32, %c0_i32_0 : i32, i32
  }
  func.func @transform_2(%arg0: i32) -> (i32, i32) {
    %c0_i32 = arith.constant 0 : i32
    %c0_i32_0 = arith.constant 0 : i32
    %c0_i32_1 = arith.constant 0 : i32
    return %c0_i32, %c0_i32_0 : i32, i32
  }
  func.func @transform_3(%arg0: i32) -> (i32, i32) {
    %c0_i32 = arith.constant 0 : i32
    %c0_i32_0 = arith.constant 0 : i32
    %c0_i32_1 = arith.constant 0 : i32
    return %c0_i32, %c0_i32_0 : i32, i32
  }
  func.func @transform_4(%arg0: i32) -> (i32, i32) {
    %c0_i32 = arith.constant 0 : i32
    %c0_i32_0 = arith.constant 0 : i32
    %c0_i32_1 = arith.constant 0 : i32
    return %c0_i32, %c0_i32_0 : i32, i32
  }
  func.func @transform_5(%arg0: i32) -> (i32, i32) {
    %c0_i32 = arith.constant 0 : i32
    %c0_i32_0 = arith.constant 0 : i32
    %c0_i32_1 = arith.constant 0 : i32
    return %c0_i32, %c0_i32_0 : i32, i32
  }
  func.func @transform_6(%arg0: i32) -> (i32, i32) {
    %c0_i32 = arith.constant 0 : i32
    %c0_i32_0 = arith.constant 0 : i32
    %c0_i32_1 = arith.constant 0 : i32
    return %c0_i32, %c0_i32_0 : i32, i32
  }
  func.func @transform_7(%arg0: i32) -> (i32, i32, i32, i32) {
    %c0_i32 = arith.constant 0 : i32
    %c0_i32_0 = arith.constant 0 : i32
    %c0_i32_1 = arith.constant 0 : i32
    %c0_i32_2 = arith.constant 0 : i32
    return %arg0, %c0_i32, %c0_i32_0, %c0_i32_1 : i32, i32, i32, i32
  }
}

</mosaic_0001>

<llo_original>
// kernel: bottleneck_forward.1
$region0: #{bottleneck_forward.1}
  #allocation0 [shape = 'u32[]', space=smem, size = 0x4, offset = 0x4, fixed_abs, tag = 'smem constant byte address 0x4 - core index']
  #allocation1 [shape = 'u32[144,128]{1,0:T(1,128)}', space=vmem, size = 0x12000, scoped, tag = 'internal scratch']
  #allocation2 [shape = 'f32[18,18,8]{2,1,0:T(8,128)}', space=vmem, size = 0x36000, scoped, tag = 'scratch operand']
  #allocation3 [shape = 'bf16[256,72]{1,0:T(16,128)(2,1)}', space=vmem, size = 0x10000, scoped, tag = 'scratch operand']
  %s0 = inlined_call_operand.hbm [shape: f32[2,16,16,32], index: 0, kind: input, shape index: {}]
  %s1 = inlined_call_operand.vmem [shape: bf16[32,8], index: 1, kind: input, shape index: {}]
  %s2 = inlined_call_operand.vmem [shape: f32[1,8], index: 2, kind: input, shape index: {}]
  %s3 = inlined_call_operand.vmem [shape: bf16[72,8], index: 3, kind: input, shape index: {}]
  %s4 = inlined_call_operand.vmem [shape: f32[1,8], index: 4, kind: input, shape index: {}]
  %s5 = inlined_call_operand.vmem [shape: bf16[8,32], index: 5, kind: input, shape index: {}]
  %s6 = inlined_call_operand.vmem [shape: f32[1,32], index: 6, kind: input, shape index: {}]
  %s7 = inlined_call_operand.hbm [shape: f32[2,16,16,32], index: 7, kind: output, shape index: {}]
  %s8 = sld [smem:[#allocation0]]
  $region65: #{bottleneck_forward.1} parent=0
    _
  %s10 = ssub.s32 1, %s8
  %s11 = scalar_select 0, %s10, %s8
  $region1: #{bottleneck_forward.1} parent=0
    #allocation4 [shape = 'u8[262144]{0}', space=vmem, size = 0x40000, scoped, tag = 'input window, operand 0']
    #allocation5 [shape = 's32[2]{0}', space=sflag, size = 0x8, scoped, tag = 'scoped memory for bottleneck_forward.1']
    #allocation6 [shape = 's32[2]{0}', space=sflag, size = 0x8, scoped, tag = 'scoped memory for bottleneck_forward.1']
    #allocation7 [shape = 'u8[262144]{0}', space=vmem, size = 0x40000, scoped, tag = 'output window, operand 0']
    %12 = vsyncpa [#allocation5], 0
    %s13 = scalar_lea.sflag [#allocation5], 1
    %14 = vsyncpa %s13, 0
    %15 = vsyncpa [#allocation6], 0
    %s16 = scalar_lea.sflag [#allocation6], 1
    %17 = vsyncpa %s16, 0
    loop: start=0, step=1, limit=4
    $region2: #{bottleneck_forward.1} parent=1 // loop_pre_header
      _
    $region3: #{bottleneck_forward.1} parent=1 // loop_header
      %s19 = sphi 0, %s23
      %p20 = scmp.ge.s32.totalorder %s19, 4
      %s29 = sphi 0, %s31
      %s32 = sphi 0, %s29
      %s33 = sphi 0, %s32
      %s49 = sphi 0, %s33
      %s53 = sphi 0, %s53
      %s55 = sphi 0, %s53
      %s56 = sphi 0, %s55
      %s70 = sphi 0, %s56
      %s74 = sphi 0, %s74
      %s76 = sphi 0, %s74
      %s77 = sphi 0, %s76
      %s91 = sphi 0, %s77
      %s95 = sphi 0, %s95
      %s97 = sphi 0, %s95
      %s98 = sphi 0, %s97
      %s112 = sphi 0, %s98
      %s116 = sphi 0, %s116
      %s118 = sphi 0, %s116
      %s119 = sphi 0, %s118
      %s133 = sphi 0, %s119
      %s137 = sphi 0, %s137
      %s139 = sphi 0, %s137
      %s140 = sphi 0, %s139
      %s154 = sphi 0, %s140
      %s158 = sphi 0, %s158
      %s160 = sphi 0, %s158
      %s161 = sphi 0, %s160
      %s175 = sphi 0, %s161
      %s181 = sphi 0, %s183
      %s184 = sphi 0, %s181
      %s185 = sphi 0, %s184
      %s201 = sphi 0, %s185
    $region4: #{bottleneck_forward.1} parent=1 // loop_header_branch
      %22 = sbr.rel (%p20) target = $region8
    $region5: #{bottleneck_forward.1} parent=1 // loop_body
      %s24 = ssub.s32 %s19, 1
      %s25 = ssub.s32 %s19, 2
      %s26 = sadd.s32 %s19, 1
      %s27 = ssub.s32 %s19, %s26
      %p28 = scmp.eq.s32.totalorder %s27, 0
      %s30 = sadd.s32 %s29, 1
      %s31 = scalar_select %p28, %s29, %s30
      %p34 = pneg %p28
      %p35 = scmp.eq.s32.totalorder %s19, 1
      %p36 = por %p34, %p35
      %p37 = scmp.ne.s32.totalorder %s29, %s32
      %p38 = scmp.eq.s32.totalorder %s19, 0
      %p39 = por %p37, %p38
      %p40 = scmp.ne.s32.totalorder %s29, %s32
      %p41 = scmp.eq.s32.totalorder %s24, 1
      %p42 = por %p40, %p41
      %p43 = scmp.ne.s32.totalorder %s32, %s33
      %p44 = scmp.eq.s32.totalorder %s24, 0
      %p45 = por %p43, %p44
      %p46 = scmp.ne.s32.totalorder %s32, %s33
      %p47 = scmp.eq.s32.totalorder %s25, 1
      %p48 = por %p46, %p47
      %p50 = scmp.ne.s32.totalorder %s33, %s49
      %p51 = scmp.eq.s32.totalorder %s25, 0
      %p52 = por %p50, %p51
      %s54 = sadd.s32 %s53, 1
      %p57 = scmp.eq.s32.totalorder %s19, 1
      %p58 = scmp.ne.s32.totalorder %s53, %s55
      %p59 = scmp.eq.s32.totalorder %s19, 0
      %p60 = por %p58, %p59
      %p61 = scmp.ne.s32.totalorder %s53, %s55
      %p62 = scmp.eq.s32.totalorder %s24, 1
      %p63 = por %p61, %p62
      %p64 = scmp.ne.s32.totalorder %s55, %s56
      %p65 = scmp.eq.s32.totalorder %s24, 0
      %p66 = por %p64, %p65
      %p67 = scmp.ne.s32.totalorder %s55, %s56
      %p68 = scmp.eq.s32.totalorder %s25, 1
      %p69 = por %p67, %p68
      %p71 = scmp.ne.s32.totalorder %s56, %s70
      %p72 = scmp.eq.s32.totalorder %s25, 0
      %p73 = por %p71, %p72
      %s75 = sadd.s32 %s74, 1
      %p78 = scmp.eq.s32.totalorder %s19, 1
      %p79 = scmp.ne.s32.totalorder %s74, %s76
      %p80 = scmp.eq.s32.totalorder %s19, 0
      %p81 = por %p79, %p80
      %p82 = scmp.ne.s32.totalorder %s74, %s76
      %p83 = scmp.eq.s32.totalorder %s24, 1
      %p84 = por %p82, %p83
      %p85 = scmp.ne.s32.totalorder %s76, %s77
      %p86 = scmp.eq.s32.totalorder %s24, 0
      %p87 = por %p85, %p86
      %p88 = scmp.ne.s32.totalorder %s76, %s77
      %p89 = scmp.eq.s32.totalorder %s25, 1
      %p90 = por %p88, %p89
      %p92 = scmp.ne.s32.totalorder %s77, %s91
      %p93 = scmp.eq.s32.totalorder %s25, 0
      %p94 = por %p92, %p93
      %s96 = sadd.s32 %s95, 1
      %p99 = scmp.eq.s32.totalorder %s19, 1
      %p100 = scmp.ne.s32.totalorder %s95, %s97
      %p101 = scmp.eq.s32.totalorder %s19, 0
      %p102 = por %p100, %p101
      %p103 = scmp.ne.s32.totalorder %s95, %s97
      %p104 = scmp.eq.s32.totalorder %s24, 1
      %p105 = por %p103, %p104
      %p106 = scmp.ne.s32.totalorder %s97, %s98
      %p107 = scmp.eq.s32.totalorder %s24, 0
      %p108 = por %p106, %p107
      %p109 = scmp.ne.s32.totalorder %s97, %s98
      %p110 = scmp.eq.s32.totalorder %s25, 1
      %p111 = por %p109, %p110
      %p113 = scmp.ne.s32.totalorder %s98, %s112
      %p114 = scmp.eq.s32.totalorder %s25, 0
      %p115 = por %p113, %p114
      %s117 = sadd.s32 %s116, 1
      %p120 = scmp.eq.s32.totalorder %s19, 1
      %p121 = scmp.ne.s32.totalorder %s116, %s118
      %p122 = scmp.eq.s32.totalorder %s19, 0
      %p123 = por %p121, %p122
      %p124 = scmp.ne.s32.totalorder %s116, %s118
      %p125 = scmp.eq.s32.totalorder %s24, 1
      %p126 = por %p124, %p125
      %p127 = scmp.ne.s32.totalorder %s118, %s119
      %p128 = scmp.eq.s32.totalorder %s24, 0
      %p129 = por %p127, %p128
      %p130 = scmp.ne.s32.totalorder %s118, %s119
      %p131 = scmp.eq.s32.totalorder %s25, 1
      %p132 = por %p130, %p131
      %p134 = scmp.ne.s32.totalorder %s119, %s133
      %p135 = scmp.eq.s32.totalorder %s25, 0
      %p136 = por %p134, %p135
      %s138 = sadd.s32 %s137, 1
      %p141 = scmp.eq.s32.totalorder %s19, 1
      %p142 = scmp.ne.s32.totalorder %s137, %s139
      %p143 = scmp.eq.s32.totalorder %s19, 0
      %p144 = por %p142, %p143
      %p145 = scmp.ne.s32.totalorder %s137, %s139
      %p146 = scmp.eq.s32.totalorder %s24, 1
      %p147 = por %p145, %p146
      %p148 = scmp.ne.s32.totalorder %s139, %s140
      %p149 = scmp.eq.s32.totalorder %s24, 0
      %p150 = por %p148, %p149
      %p151 = scmp.ne.s32.totalorder %s139, %s140
      %p152 = scmp.eq.s32.totalorder %s25, 1
      %p153 = por %p151, %p152
      %p155 = scmp.ne.s32.totalorder %s140, %s154
      %p156 = scmp.eq.s32.totalorder %s25, 0
      %p157 = por %p155, %p156
      %s159 = sadd.s32 %s158, 1
      %p162 = scmp.eq.s32.totalorder %s19, 1
      %p163 = scmp.ne.s32.totalorder %s158, %s160
      %p164 = scmp.eq.s32.totalorder %s19, 0
      %p165 = por %p163, %p164
      %p166 = scmp.ne.s32.totalorder %s158, %s160
      %p167 = scmp.eq.s32.totalorder %s24, 1
      %p168 = por %p166, %p167
      %p169 = scmp.ne.s32.totalorder %s160, %s161
      %p170 = scmp.eq.s32.totalorder %s24, 0
      %p171 = por %p169, %p170
      %p172 = scmp.ne.s32.totalorder %s160, %s161
      %p173 = scmp.eq.s32.totalorder %s25, 1
      %p174 = por %p172, %p173
      %p176 = scmp.ne.s32.totalorder %s161, %s175
      %p177 = scmp.eq.s32.totalorder %s25, 0
      %p178 = por %p176, %p177
      %s179 = ssub.s32 %s19, %s26
      %p180 = scmp.eq.s32.totalorder %s179, 0
      %s182 = sadd.s32 %s181, 1
      %s183 = scalar_select %p180, %s181, %s182
      %p186 = pneg %p180
      %p187 = scmp.eq.s32.totalorder %s19, 1
      %p188 = por %p186, %p187
      %p189 = scmp.ne.s32.totalorder %s181, %s184
      %p190 = scmp.eq.s32.totalorder %s19, 0
      %p191 = por %p189, %p190
      %p192 = scmp.ne.s32.totalorder %s181, %s184
      %p193 = scmp.eq.s32.totalorder %s24, 1
      %p194 = por %p192, %p193
      %p195 = scmp.ne.s32.totalorder %s184, %s185
      %p196 = scmp.eq.s32.totalorder %s24, 0
      %p197 = por %p195, %p196
      %p198 = scmp.ne.s32.totalorder %s184, %s185
      %p199 = scmp.eq.s32.totalorder %s25, 1
      %p200 = por %p198, %p199
      %p202 = scmp.ne.s32.totalorder %s185, %s201
      %p203 = scmp.eq.s32.totalorder %s25, 0
      %p204 = por %p202, %p203
      %p205 = scmp.le.s32.totalorder 1, %s19
      %p206 = scmp.lt.s32.totalorder %s19, 3
      %p207 = pnand %p205, %p206
      %p208 = pneg %p207
      // Predicated region
      $region9: #{bottleneck_forward.1} parent=5 // pred_check
        _
      $region10: #{bottleneck_forward.1} parent=5 // pred_check_branch
        %210 = sbr.rel (%p207) target = $region12
      $region11: #{bottleneck_forward.1} parent=5 // pred_region
        %s211 = ssub.s32 %s19, 1
        // Predicated region
        $region13: #{bottleneck_forward.1} parent=11 // pred_check
          %p212 = pneg %p66
        $region14: #{bottleneck_forward.1} parent=11 // pred_check_branch
          %214 = sbr.rel (%p212) target = $region16
        $region15: #{bottleneck_forward.1} parent=11 // pred_region
          _
        $region16: #{bottleneck_forward.1} parent=11 // pred_fallthru
          _
        // Predicated region
        $region17: #{bottleneck_forward.1} parent=11 // pred_check
          %p215 = pneg %p87
        $region18: #{bottleneck_forward.1} parent=11 // pred_check_branch
          %217 = sbr.rel (%p215) target = $region20
        $region19: #{bottleneck_forward.1} parent=11 // pred_region
          _
        $region20: #{bottleneck_forward.1} parent=11 // pred_fallthru
          _
        // Predicated region
        $region21: #{bottleneck_forward.1} parent=11 // pred_check
          %p218 = pneg %p108
        $region22: #{bottleneck_forward.1} parent=11 // pred_check_branch
          %220 = sbr.rel (%p218) target = $region24
        $region23: #{bottleneck_forward.1} parent=11 // pred_region
          _
        $region24: #{bottleneck_forward.1} parent=11 // pred_fallthru
          _
        // Predicated region
        $region25: #{bottleneck_forward.1} parent=11 // pred_check
          %p221 = pneg %p129
        $region26: #{bottleneck_forward.1} parent=11 // pred_check_branch
          %223 = sbr.rel (%p221) target = $region28
        $region27: #{bottleneck_forward.1} parent=11 // pred_region
          _
        $region28: #{bottleneck_forward.1} parent=11 // pred_fallthru
          _
        // Predicated region
        $region29: #{bottleneck_forward.1} parent=11 // pred_check
          %p224 = pneg %p150
        $region30: #{bottleneck_forward.1} parent=11 // pred_check_branch
          %226 = sbr.rel (%p224) target = $region32
        $region31: #{bottleneck_forward.1} parent=11 // pred_region
          _
        $region32: #{bottleneck_forward.1} parent=11 // pred_fallthru
          _
        // Predicated region
        $region33: #{bottleneck_forward.1} parent=11 // pred_check
          %p227 = pneg %p171
        $region34: #{bottleneck_forward.1} parent=11 // pred_check_branch
          %229 = sbr.rel (%p227) target = $region36
        $region35: #{bottleneck_forward.1} parent=11 // pred_region
          _
        $region36: #{bottleneck_forward.1} parent=11 // pred_fallthru
          _
      $region12: #{bottleneck_forward.1} parent=5 // pred_fallthru
        _
      %p230 = scmp.lt.s32.totalorder %s19, 2
      // Predicated region
      $region37: #{bottleneck_forward.1} parent=5 // pred_check
        %p231 = pneg %p230
      $region38: #{bottleneck_forward.1} parent=5 // pred_check_branch
        %233 = sbr.rel (%p231) target = $region40
      $region39: #{bottleneck_forward.1} parent=5 // pred_region
        // Predicated region
        $region41: #{bottleneck_forward.1} parent=39 // pred_check
          %p234 = pneg %p39
        $region42: #{bottleneck_forward.1} parent=39 // pred_check_branch
          %236 = sbr.rel (%p234) target = $region44
        $region43: #{bottleneck_forward.1} parent=39 // pred_region
          %s237 = sand.u32 %s29, 1
          %s238 = scalar_lea.sflag [#allocation5], %s237
          %s239 = sand.u32 %s29, 1
          %s240 = smul.addr %s239, 256
          %s241 = scalar_lea.vmem [#allocation4], %s240
          %s243 = ssub.s32 4096, 4096
          %244 = vsyncadd %s238, %s243
          %s245 = smul.addr %s19, 32
          %s246 = smul.addr %s245, 128
          %s247 = scalar_lea.hbm %s0, %s246
          %s248 = sshll.u32 %s241, 4
          %s249 = int_to_ptr.vmem [resolvable:$true] %s248
          %254 = dma.hbm_to_vmem [thread:$0]  %s247, 4096, %s249, %s238, 128, 128, 8
        $region44: #{bottleneck_forward.1} parent=39 // pred_fallthru
          _
      $region40: #{bottleneck_forward.1} parent=5 // pred_fallthru
        _
      %p255 = scmp.le.s32.totalorder 1, %s19
      %p256 = scmp.lt.s32.totalorder %s19, 3
      %p257 = pnand %p255, %p256
      %p258 = pneg %p257
      // Predicated region
      $region45: #{bottleneck_forward.1} parent=5 // pred_check
        _
      $region46: #{bottleneck_forward.1} parent=5 // pred_check_branch
        %260 = sbr.rel (%p257) target = $region48
      $region47: #{bottleneck_forward.1} parent=5 // pred_region
        %s261 = ssub.s32 %s19, 1
        %s262 = sand.u32 %s32, 1
        %s263 = scalar_lea.sflag [#allocation5], %s262
        %s264 = sand.u32 %s32, 1
        %s265 = smul.addr %s264, 256
        %s266 = scalar_lea.vmem [#allocation4], %s265
        // Predicated region
        $region49: #{bottleneck_forward.1} parent=47 // pred_check
          %p267 = pneg %p45
        $region50: #{bottleneck_forward.1} parent=47 // pred_check_branch
          %269 = sbr.rel (%p267) target = $region52
        $region51: #{bottleneck_forward.1} parent=47 // pred_region
          %270 = dma.done %s263, 4096
        $region52: #{bottleneck_forward.1} parent=47 // pred_fallthru
          _
        %s271 = sand.u32 %s32, 1
        %s272 = scalar_lea.sflag [#allocation5], %s271
        %s273 = sand.u32 %s32, 1
        %s274 = smul.addr %s273, 256
        %s275 = scalar_lea.vmem [#allocation4], %s274
        %p276 = pneg %p45
        %p277 = pneg %p42
        %p278 = pneg %p66
        %p279 = pneg %p63
        %p280 = pneg %p87
        %p281 = pneg %p84
        %p282 = pneg %p108
        %p283 = pneg %p105
        %p284 = pneg %p129
        %p285 = pneg %p126
        %p286 = pneg %p150
        %p287 = pneg %p147
        %p288 = pneg %p171
        %p289 = pneg %p168
        %p290 = pneg %p197
        %p291 = pneg %p194
        %s292 = sand.u32 %s184, 1
        %s293 = scalar_lea.sflag [#allocation6], %s292
        %s294 = sand.u32 %s184, 1
        %s295 = smul.addr %s294, 256
        %s296 = scalar_lea.vmem [#allocation7], %s295
        %v298 = vld [vmem:[%s266] sm:$0xff]
        %v299 = vld [vmem:[%s266 + $0x8] sm:$0xff]
        %v300 = vld [vmem:[%s266 + $0x10] sm:$0xff]
        %v301 = vld [vmem:[%s266 + $0x18] sm:$0xff]
        %v302 = vld [vmem:[%s266 + $0x20] sm:$0xff]
        %v303 = vld [vmem:[%s266 + $0x28] sm:$0xff]
        %v304 = vld [vmem:[%s266 + $0x30] sm:$0xff]
        %v305 = vld [vmem:[%s266 + $0x38] sm:$0xff]
        %v306 = vld [vmem:[%s266 + $0x40] sm:$0xff]
        %v307 = vld [vmem:[%s266 + $0x48] sm:$0xff]
        %v308 = vld [vmem:[%s266 + $0x50] sm:$0xff]
        %v309 = vld [vmem:[%s266 + $0x58] sm:$0xff]
        %v310 = vld [vmem:[%s266 + $0x60] sm:$0xff]
        %v311 = vld [vmem:[%s266 + $0x68] sm:$0xff]
        %v312 = vld [vmem:[%s266 + $0x70] sm:$0xff]
        %v313 = vld [vmem:[%s266 + $0x78] sm:$0xff]
        %v314 = vld [vmem:[%s266 + $0x80] sm:$0xff]
        %v315 = vld [vmem:[%s266 + $0x88] sm:$0xff]
        %v316 = vld [vmem:[%s266 + $0x90] sm:$0xff]
        %v317 = vld [vmem:[%s266 + $0x98] sm:$0xff]
        %v318 = vld [vmem:[%s266 + $0xa0] sm:$0xff]
        %v319 = vld [vmem:[%s266 + $0xa8] sm:$0xff]
        %v320 = vld [vmem:[%s266 + $0xb0] sm:$0xff]
        %v321 = vld [vmem:[%s266 + $0xb8] sm:$0xff]
        %v322 = vld [vmem:[%s266 + $0xc0] sm:$0xff]
        %v323 = vld [vmem:[%s266 + $0xc8] sm:$0xff]
        %v324 = vld [vmem:[%s266 + $0xd0] sm:$0xff]
        %v325 = vld [vmem:[%s266 + $0xd8] sm:$0xff]
        %v326 = vld [vmem:[%s266 + $0xe0] sm:$0xff]
        %v327 = vld [vmem:[%s266 + $0xe8] sm:$0xff]
        %v328 = vld [vmem:[%s266 + $0xf0] sm:$0xff]
        %v329 = vld [vmem:[%s266 + $0xf8] sm:$0xff]
        %v330 = vpack.c.bf16 %v299, %v298
        %v331 = vpack.c.bf16 %v301, %v300
        %v332 = vpack.c.bf16 %v303, %v302
        %v333 = vpack.c.bf16 %v305, %v304
        %v334 = vpack.c.bf16 %v307, %v306
        %v335 = vpack.c.bf16 %v309, %v308
        %v336 = vpack.c.bf16 %v311, %v310
        %v337 = vpack.c.bf16 %v313, %v312
        %v338 = vpack.c.bf16 %v315, %v314
        %v339 = vpack.c.bf16 %v317, %v316
        %v340 = vpack.c.bf16 %v319, %v318
        %v341 = vpack.c.bf16 %v321, %v320
        %v342 = vpack.c.bf16 %v323, %v322
        %v343 = vpack.c.bf16 %v325, %v324
        %v344 = vpack.c.bf16 %v327, %v326
        %v345 = vpack.c.bf16 %v329, %v328
        %v346 = vld [vmem:[%s1] sm:$0xf]
        %v347 = vld [vmem:[%s1 + $0x4] sm:$0xf]
        %v348 = vld [vmem:[%s1 + $0x8] sm:$0xf]
        %v349 = vld [vmem:[%s1 + $0xc] sm:$0xf]
        %v350 = vld [vmem:[%s2] sm:$0x1]
        %v352 = vlaneseq
        %v353 = vshrl.u32 %v352, 7
        %v354 = vsub.s32 0, %v353
        %v355 = vrot.slane %v350, %v354
        %v361 = vunpack.c.l.b16 %v346
        %v362 = vunpack.c.l.b16 %v347
        %v363 = vunpack.c.l.b16 %v348
        %v364 = vunpack.c.l.b16 %v349
        %v365 = vpack.c.b16 %v362, %v361
        %v366 = vpack.c.b16 %v364, %v363
        %vm369 = vcmask 261120
        %v371 = vsel %vm369, %v330, 0
        %v374 = vsel %vm369, %v331, 0
        %v377 = vsel %vm369, %v332, 0
        %v380 = vsel %vm369, %v333, 0
        %v383 = vsel %vm369, %v334, 0
        %v386 = vsel %vm369, %v335, 0
        %v389 = vsel %vm369, %v336, 0
        %v392 = vsel %vm369, %v337, 0
        %v395 = vsel %vm369, %v338, 0
        %v398 = vsel %vm369, %v339, 0
        %v401 = vsel %vm369, %v340, 0
        %v404 = vsel %vm369, %v341, 0
        %v407 = vsel %vm369, %v342, 0
        %v410 = vsel %vm369, %v343, 0
        %v413 = vsel %vm369, %v344, 0
        %v416 = vsel %vm369, %v345, 0
        %418 = vmatprep.subr.bf16.mxu0 0
        %419 = vmatpush1.bf16.msra.mxu0 %v365
        %420 = vmatprep.subr.bf16.mxu0 0
        %421 = vmatpush1.bf16.msra.mxu0 %v366
        %422 = vmatprep.subr.bf16.mxu0 0
        %423 = vmatpush1.bf16.msra.mxu0 0
        %424 = vmatprep.subr.bf16.mxu0 0
        %425 = vmatpush1.bf16.msra.mxu0 0
        %426 = vmatprep.subr.bf16.mxu0 0
        %427 = vmatpush1.bf16.msra.mxu0 0
        %428 = vmatprep.subr.bf16.mxu0 0
        %429 = vmatpush1.bf16.msra.mxu0 0
        %430 = vmatprep.subr.bf16.mxu0 0
        %431 = vmatpush1.bf16.msra.mxu0 0
        %432 = vmatprep.subr.bf16.mxu0 0
        %433 = vmatpush1.bf16.msra.mxu0 0
        %434 = vmatprep.subr.bf16.mxu0 0
        %435 = vmatpush1.bf16.msra.mxu0 0
        %436 = vmatprep.subr.bf16.mxu0 0
        %437 = vmatpush1.bf16.msra.mxu0 0
        %438 = vmatprep.subr.bf16.mxu0 0
        %439 = vmatpush1.bf16.msra.mxu0 0
        %440 = vmatprep.subr.bf16.mxu0 0
        %441 = vmatpush1.bf16.msra.mxu0 0
        %442 = vmatprep.subr.bf16.mxu0 0
        %443 = vmatpush1.bf16.msra.mxu0 0
        %444 = vmatprep.subr.bf16.mxu0 0
        %445 = vmatpush1.bf16.msra.mxu0 0
        %446 = vmatprep.subr.bf16.mxu0 0
        %447 = vmatpush1.bf16.msra.mxu0 0
        %448 = vmatprep.subr.bf16.mxu0 0
        %449 = vmatpush1.bf16.msra.mxu0 0
        %450 = vmatprep.mubr.bf16.mxu0 0
        %451 = vmatmul.mubr.bf16.gmra.mrb[0].mxu0 %v371
        %v452 = vpop.f32.mrb[0].mxu0
        %v453 = vadd.f32 %v355, %v452
        %v454 = vpop.f32.mrb[0].mxu0
        %v455 = vpop.f32.mrb[0].mxu0
        %v456 = vadd.f32 %v355, %v455
        %v457 = vpop.f32.mrb[0].mxu0
        %458 = vmatprep.mubr.bf16.mxu0 0
        %459 = vmatmul.mubr.bf16.gmra.mrb[0].mxu0 %v374
        %v460 = vpop.f32.mrb[0].mxu0
        %v461 = vadd.f32 %v355, %v460
        %v462 = vpop.f32.mrb[0].mxu0
        %v463 = vpop.f32.mrb[0].mxu0
        %v464 = vadd.f32 %v355, %v463
        %v465 = vpop.f32.mrb[0].mxu0
        %466 = vmatprep.mubr.bf16.mxu0 0
        %467 = vmatmul.mubr.bf16.gmra.mrb[0].mxu0 %v377
        %v468 = vpop.f32.mrb[0].mxu0
        %v469 = vadd.f32 %v355, %v468
        %v470 = vpop.f32.mrb[0].mxu0
        %v471 = vpop.f32.mrb[0].mxu0
        %v472 = vadd.f32 %v355, %v471
        %v473 = vpop.f32.mrb[0].mxu0
        %474 = vmatprep.mubr.bf16.mxu0 0
        %475 = vmatmul.mubr.bf16.gmra.mrb[0].mxu0 %v380
        %v476 = vpop.f32.mrb[0].mxu0
        %v477 = vadd.f32 %v355, %v476
        %v478 = vpop.f32.mrb[0].mxu0
        %v479 = vpop.f32.mrb[0].mxu0
        %v480 = vadd.f32 %v355, %v479
        %v481 = vpop.f32.mrb[0].mxu0
        %482 = vmatprep.mubr.bf16.mxu0 0
        %483 = vmatmul.mubr.bf16.gmra.mrb[0].mxu0 %v383
        %v484 = vpop.f32.mrb[0].mxu0
        %v485 = vadd.f32 %v355, %v484
        %v486 = vpop.f32.mrb[0].mxu0
        %v487 = vpop.f32.mrb[0].mxu0
        %v488 = vadd.f32 %v355, %v487
        %v489 = vpop.f32.mrb[0].mxu0
        %490 = vmatprep.mubr.bf16.mxu0 0
        %491 = vmatmul.mubr.bf16.gmra.mrb[0].mxu0 %v386
        %v492 = vpop.f32.mrb[0].mxu0
        %v493 = vadd.f32 %v355, %v492
        %v494 = vpop.f32.mrb[0].mxu0
        %v495 = vpop.f32.mrb[0].mxu0
        %v496 = vadd.f32 %v355, %v495
        %v497 = vpop.f32.mrb[0].mxu0
        %498 = vmatprep.mubr.bf16.mxu0 0
        %499 = vmatmul.mubr.bf16.gmra.mrb[0].mxu0 %v389
        %v500 = vpop.f32.mrb[0].mxu0
        %v501 = vadd.f32 %v355, %v500
        %v502 = vpop.f32.mrb[0].mxu0
        %v503 = vpop.f32.mrb[0].mxu0
        %v504 = vadd.f32 %v355, %v503
        %v505 = vpop.f32.mrb[0].mxu0
        %506 = vmatprep.mubr.bf16.mxu0 0
        %507 = vmatmul.mubr.bf16.gmra.mrb[0].mxu0 %v392
        %v508 = vpop.f32.mrb[0].mxu0
        %v509 = vadd.f32 %v355, %v508
        %v510 = vpop.f32.mrb[0].mxu0
        %v511 = vpop.f32.mrb[0].mxu0
        %v512 = vadd.f32 %v355, %v511
        %v513 = vpop.f32.mrb[0].mxu0
        %514 = vmatprep.mubr.bf16.mxu0 0
        %515 = vmatmul.mubr.bf16.gmra.mrb[0].mxu0 %v395
        %v516 = vpop.f32.mrb[0].mxu0
        %v517 = vadd.f32 %v355, %v516
        %v518 = vpop.f32.mrb[0].mxu0
        %v519 = vpop.f32.mrb[0].mxu0
        %v520 = vadd.f32 %v355, %v519
        %v521 = vpop.f32.mrb[0].mxu0
        %522 = vmatprep.mubr.bf16.mxu0 0
        %523 = vmatmul.mubr.bf16.gmra.mrb[0].mxu0 %v398
        %v524 = vpop.f32.mrb[0].mxu0
        %v525 = vadd.f32 %v355, %v524
        %v526 = vpop.f32.mrb[0].mxu0
        %v527 = vpop.f32.mrb[0].mxu0
        %v528 = vadd.f32 %v355, %v527
        %v529 = vpop.f32.mrb[0].mxu0
        %530 = vmatprep.mubr.bf16.mxu0 0
        %531 = vmatmul.mubr.bf16.gmra.mrb[0].mxu0 %v401
        %v532 = vpop.f32.mrb[0].mxu0
        %v533 = vadd.f32 %v355, %v532
        %v534 = vpop.f32.mrb[0].mxu0
        %v535 = vpop.f32.mrb[0].mxu0
        %v536 = vadd.f32 %v355, %v535
        %v537 = vpop.f32.mrb[0].mxu0
        %538 = vmatprep.mubr.bf16.mxu0 0
        %539 = vmatmul.mubr.bf16.gmra.mrb[0].mxu0 %v404
        %v540 = vpop.f32.mrb[0].mxu0
        %v541 = vadd.f32 %v355, %v540
        %v542 = vpop.f32.mrb[0].mxu0
        %v543 = vpop.f32.mrb[0].mxu0
        %v544 = vadd.f32 %v355, %v543
        %v545 = vpop.f32.mrb[0].mxu0
        %546 = vmatprep.mubr.bf16.mxu0 0
        %547 = vmatmul.mubr.bf16.gmra.mrb[0].mxu0 %v407
        %v548 = vpop.f32.mrb[0].mxu0
        %v549 = vadd.f32 %v355, %v548
        %v550 = vpop.f32.mrb[0].mxu0
        %v551 = vpop.f32.mrb[0].mxu0
        %v552 = vadd.f32 %v355, %v551
        %v553 = vpop.f32.mrb[0].mxu0
        %554 = vmatprep.mubr.bf16.mxu0 0
        %555 = vmatmul.mubr.bf16.gmra.mrb[0].mxu0 %v410
        %v556 = vpop.f32.mrb[0].mxu0
        %v557 = vadd.f32 %v355, %v556
        %v558 = vpop.f32.mrb[0].mxu0
        %v559 = vpop.f32.mrb[0].mxu0
        %v560 = vadd.f32 %v355, %v559
        %v561 = vpop.f32.mrb[0].mxu0
        %562 = vmatprep.mubr.bf16.mxu0 0
        %563 = vmatmul.mubr.bf16.gmra.mrb[0].mxu0 %v413
        %v564 = vpop.f32.mrb[0].mxu0
        %v565 = vadd.f32 %v355, %v564
        %v566 = vpop.f32.mrb[0].mxu0
        %v567 = vpop.f32.mrb[0].mxu0
        %v568 = vadd.f32 %v355, %v567
        %v569 = vpop.f32.mrb[0].mxu0
        %570 = vmatprep.mubr.bf16.mxu0 0
        %571 = vmatmul.mubr.bf16.gmra.mrb[0].mxu0 %v416
        %v572 = vpop.f32.mrb[0].mxu0
        %v573 = vadd.f32 %v355, %v572
        %v574 = vpop.f32.mrb[0].mxu0
        %v575 = vpop.f32.mrb[0].mxu0
        %v576 = vadd.f32 %v355, %v575
        %v577 = vpop.f32.mrb[0].mxu0
        %578 = vdwg.mxu0
        %v579 = vmax.f32 %v453, 0.0
        %v580 = vmax.f32 %v456, 0.0
        %v581 = vmax.f32 %v461, 0.0
        %v582 = vmax.f32 %v464, 0.0
        %v583 = vmax.f32 %v469, 0.0
        %v584 = vmax.f32 %v472, 0.0
        %v585 = vmax.f32 %v477, 0.0
        %v586 = vmax.f32 %v480, 0.0
        %v587 = vmax.f32 %v485, 0.0
        %v588 = vmax.f32 %v488, 0.0
        %v589 = vmax.f32 %v493, 0.0
        %v590 = vmax.f32 %v496, 0.0
        %v591 = vmax.f32 %v501, 0.0
        %v592 = vmax.f32 %v504, 0.0
        %v593 = vmax.f32 %v509, 0.0
        %v594 = vmax.f32 %v512, 0.0
        %v595 = vmax.f32 %v517, 0.0
        %v596 = vmax.f32 %v520, 0.0
        %v597 = vmax.f32 %v525, 0.0
        %v598 = vmax.f32 %v528, 0.0
        %v599 = vmax.f32 %v533, 0.0
        %v600 = vmax.f32 %v536, 0.0
        %v601 = vmax.f32 %v541, 0.0
        %v602 = vmax.f32 %v544, 0.0
        %v603 = vmax.f32 %v549, 0.0
        %v604 = vmax.f32 %v552, 0.0
        %v605 = vmax.f32 %v557, 0.0
        %v606 = vmax.f32 %v560, 0.0
        %v607 = vmax.f32 %v565, 0.0
        %v608 = vmax.f32 %v568, 0.0
        %v609 = vmax.f32 %v573, 0.0
        %v610 = vmax.f32 %v576, 0.0
        %v611 = vpack.c.bf16 %v580, %v579
        %v612 = vpack.c.bf16 %v582, %v581
        %v613 = vpack.c.bf16 %v584, %v583
        %v614 = vpack.c.bf16 %v586, %v585
        %v615 = vpack.c.bf16 %v588, %v587
        %v616 = vpack.c.bf16 %v590, %v589
        %v617 = vpack.c.bf16 %v592, %v591
        %v618 = vpack.c.bf16 %v594, %v593
        %v619 = vpack.c.bf16 %v596, %v595
        %v620 = vpack.c.bf16 %v598, %v597
        %v621 = vpack.c.bf16 %v600, %v599
        %v622 = vpack.c.bf16 %v602, %v601
        %v623 = vpack.c.bf16 %v604, %v603
        %v624 = vpack.c.bf16 %v606, %v605
        %v625 = vpack.c.bf16 %v608, %v607
        %v626 = vpack.c.bf16 %v610, %v609
        %vm627 = vcmask 64512
        %628 = vst.msk [vmem:[#allocation2] sm:$0xff] %vm627, 0.0
        %629 = vst.msk [vmem:[#allocation2 + $0x8] sm:$0xff] %vm627, 0.0
        %vm630 = vcmask 58368
        %631 = vst.msk [vmem:[#allocation2 + $0x10] sm:$0x3] %vm630, 0.0
        %s632 = scalar_lea.vmem [#allocation2], 408
        %633 = vst.msk [vmem:[%s632] sm:$0xff] %vm627, 0.0
        %634 = vst.msk [vmem:[%s632 + $0x8] sm:$0xff] %vm627, 0.0
        %635 = vst.msk [vmem:[%s632 + $0x10] sm:$0x3] %vm630, 0.0
        %s636 = scalar_lea.vmem [#allocation2], 24
        %vm637 = vcmask 57344
        %638 = vst.msk [vmem:[%s636] sm:$0x1] %vm637, 0.0
        %639 = vst.msk [vmem:[%s636 + $0x18] sm:$0x1] %vm637, 0.0
        %640 = vst.msk [vmem:[%s636 + $0x30] sm:$0x1] %vm637, 0.0
        %641 = vst.msk [vmem:[%s636 + $0x48] sm:$0x1] %vm637, 0.0
        %642 = vst.msk [vmem:[%s636 + $0x60] sm:$0x1] %vm637, 0.0
        %643 = vst.msk [vmem:[%s636 + $0x78] sm:$0x1] %vm637, 0.0
        %644 = vst.msk [vmem:[%s636 + $0x90] sm:$0x1] %vm637, 0.0
        %645 = vst.msk [vmem:[%s636 + $0xa8] sm:$0x1] %vm637, 0.0
        %646 = vst.msk [vmem:[%s636 + $0xc0] sm:$0x1] %vm637, 0.0
        %647 = vst.msk [vmem:[%s636 + $0xd8] sm:$0x1] %vm637, 0.0
        %648 = vst.msk [vmem:[%s636 + $0xf0] sm:$0x1] %vm637, 0.0
        %649 = vst.msk [vmem:[%s636 + $0x108] sm:$0x1] %vm637, 0.0
        %650 = vst.msk [vmem:[%s636 + $0x120] sm:$0x1] %vm637, 0.0
        %651 = vst.msk [vmem:[%s636 + $0x138] sm:$0x1] %vm637, 0.0
        %652 = vst.msk [vmem:[%s636 + $0x150] sm:$0x1] %vm637, 0.0
        %653 = vst.msk [vmem:[%s636 + $0x168] sm:$0x1] %vm637, 0.0
        %654 = vst.msk [vmem:[%s636 + $0x11] sm:$0x1] %vm637, 0.0
        %655 = vst.msk [vmem:[%s636 + $0x29] sm:$0x1] %vm637, 0.0
        %656 = vst.msk [vmem:[%s636 + $0x41] sm:$0x1] %vm637, 0.0
        %657 = vst.msk [vmem:[%s636 + $0x59] sm:$0x1] %vm637, 0.0
        %658 = vst.msk [vmem:[%s636 + $0x71] sm:$0x1] %vm637, 0.0
        %659 = vst.msk [vmem:[%s636 + $0x89] sm:$0x1] %vm637, 0.0
        %660 = vst.msk [vmem:[%s636 + $0xa1] sm:$0x1] %vm637, 0.0
        %661 = vst.msk [vmem:[%s636 + $0xb9] sm:$0x1] %vm637, 0.0
        %662 = vst.msk [vmem:[%s636 + $0xd1] sm:$0x1] %vm637, 0.0
        %663 = vst.msk [vmem:[%s636 + $0xe9] sm:$0x1] %vm637, 0.0
        %664 = vst.msk [vmem:[%s636 + $0x101] sm:$0x1] %vm637, 0.0
        %665 = vst.msk [vmem:[%s636 + $0x119] sm:$0x1] %vm637, 0.0
        %666 = vst.msk [vmem:[%s636 + $0x131] sm:$0x1] %vm637, 0.0
        %667 = vst.msk [vmem:[%s636 + $0x149] sm:$0x1] %vm637, 0.0
        %668 = vst.msk [vmem:[%s636 + $0x161] sm:$0x1] %vm637, 0.0
        %669 = vst.msk [vmem:[%s636 + $0x179] sm:$0x1] %vm637, 0.0
        %670 = vst.msk [vmem:[%s636 + $0x1] sm:$0xff] %vm627, %v579
        %671 = vst.msk [vmem:[%s636 + $0x9] sm:$0xff] %vm627, %v580
        %672 = vst.msk [vmem:[%s636 + $0x19] sm:$0xff] %vm627, %v581
        %673 = vst.msk [vmem:[%s636 + $0x21] sm:$0xff] %vm627, %v582
        %674 = vst.msk [vmem:[%s636 + $0x31] sm:$0xff] %vm627, %v583
        %675 = vst.msk [vmem:[%s636 + $0x39] sm:$0xff] %vm627, %v584
        %676 = vst.msk [vmem:[%s636 + $0x49] sm:$0xff] %vm627, %v585
        %677 = vst.msk [vmem:[%s636 + $0x51] sm:$0xff] %vm627, %v586
        %678 = vst.msk [vmem:[%s636 + $0x61] sm:$0xff] %vm627, %v587
        %679 = vst.msk [vmem:[%s636 + $0x69] sm:$0xff] %vm627, %v588
        %680 = vst.msk [vmem:[%s636 + $0x79] sm:$0xff] %vm627, %v589
        %681 = vst.msk [vmem:[%s636 + $0x81] sm:$0xff] %vm627, %v590
        %682 = vst.msk [vmem:[%s636 + $0x91] sm:$0xff] %vm627, %v591
        %683 = vst.msk [vmem:[%s636 + $0x99] sm:$0xff] %vm627, %v592
        %684 = vst.msk [vmem:[%s636 + $0xa9] sm:$0xff] %vm627, %v593
        %685 = vst.msk [vmem:[%s636 + $0xb1] sm:$0xff] %vm627, %v594
        %686 = vst.msk [vmem:[%s636 + $0xc1] sm:$0xff] %vm627, %v595
        %687 = vst.msk [vmem:[%s636 + $0xc9] sm:$0xff] %vm627, %v596
        %688 = vst.msk [vmem:[%s636 + $0xd9] sm:$0xff] %vm627, %v597
        %689 = vst.msk [vmem:[%s636 + $0xe1] sm:$0xff] %vm627, %v598
        %690 = vst.msk [vmem:[%s636 + $0xf1] sm:$0xff] %vm627, %v599
        %691 = vst.msk [vmem:[%s636 + $0xf9] sm:$0xff] %vm627, %v600
        %692 = vst.msk [vmem:[%s636 + $0x109] sm:$0xff] %vm627, %v601
        %693 = vst.msk [vmem:[%s636 + $0x111] sm:$0xff] %vm627, %v602
        %694 = vst.msk [vmem:[%s636 + $0x121] sm:$0xff] %vm627, %v603
        %695 = vst.msk [vmem:[%s636 + $0x129] sm:$0xff] %vm627, %v604
        %696 = vst.msk [vmem:[%s636 + $0x139] sm:$0xff] %vm627, %v605
        %697 = vst.msk [vmem:[%s636 + $0x141] sm:$0xff] %vm627, %v606
        %698 = vst.msk [vmem:[%s636 + $0x151] sm:$0xff] %vm627, %v607
        %699 = vst.msk [vmem:[%s636 + $0x159] sm:$0xff] %vm627, %v608
        %700 = vst.msk [vmem:[%s636 + $0x169] sm:$0xff] %vm627, %v609
        %701 = vst.msk [vmem:[%s636 + $0x171] sm:$0xff] %vm627, %v610
        %v702 = vld [vmem:[#allocation2] sm:$0xff]
        %v703 = vld [vmem:[#allocation2 + $0x8] sm:$0xff]
        %v704 = vld [vmem:[#allocation2 + $0x18] sm:$0xff]
        %v705 = vld [vmem:[#allocation2 + $0x20] sm:$0xff]
        %v706 = vld [vmem:[#allocation2 + $0x30] sm:$0xff]
        %v707 = vld [vmem:[#allocation2 + $0x38] sm:$0xff]
        %v708 = vld [vmem:[#allocation2 + $0x48] sm:$0xff]
        %v709 = vld [vmem:[#allocation2 + $0x50] sm:$0xff]
        %v710 = vld [vmem:[#allocation2 + $0x60] sm:$0xff]
        %v711 = vld [vmem:[#allocation2 + $0x68] sm:$0xff]
        %v712 = vld [vmem:[#allocation2 + $0x78] sm:$0xff]
        %v713 = vld [vmem:[#allocation2 + $0x80] sm:$0xff]
        %v714 = vld [vmem:[#allocation2 + $0x90] sm:$0xff]
        %v715 = vld [vmem:[#allocation2 + $0x98] sm:$0xff]
        %v716 = vld [vmem:[#allocation2 + $0xa8] sm:$0xff]
        %v717 = vld [vmem:[#allocation2 + $0xb0] sm:$0xff]
        %v718 = vld [vmem:[#allocation2 + $0xc0] sm:$0xff]
        %v719 = vld [vmem:[#allocation2 + $0xc8] sm:$0xff]
        %v720 = vld [vmem:[#allocation2 + $0xd8] sm:$0xff]
        %v721 = vld [vmem:[#allocation2 + $0xe0] sm:$0xff]
        %v722 = vld [vmem:[#allocation2 + $0xf0] sm:$0xff]
        %v723 = vld [vmem:[#allocation2 + $0xf8] sm:$0xff]
        %v724 = vld [vmem:[#allocation2 + $0x108] sm:$0xff]
        %v725 = vld [vmem:[#allocation2 + $0x110] sm:$0xff]
        %v726 = vld [vmem:[#allocation2 + $0x120] sm:$0xff]
        %v727 = vld [vmem:[#allocation2 + $0x128] sm:$0xff]
        %v728 = vld [vmem:[#allocation2 + $0x138] sm:$0xff]
        %v729 = vld [vmem:[#allocation2 + $0x140] sm:$0xff]
        %v730 = vld [vmem:[#allocation2 + $0x150] sm:$0xff]
        %v731 = vld [vmem:[#allocation2 + $0x158] sm:$0xff]
        %v732 = vld [vmem:[#allocation2 + $0x168] sm:$0xff]
        %v733 = vld [vmem:[#allocation2 + $0x170] sm:$0xff]
        %v734 = vpack.c.bf16 %v703, %v702
        %v735 = vpack.c.bf16 %v705, %v704
        %v736 = vpack.c.bf16 %v707, %v706
        %v737 = vpack.c.bf16 %v709, %v708
        %v738 = vpack.c.bf16 %v711, %v710
        %v739 = vpack.c.bf16 %v713, %v712
        %v740 = vpack.c.bf16 %v715, %v714
        %v741 = vpack.c.bf16 %v717, %v716
        %v742 = vpack.c.bf16 %v719, %v718
        %v743 = vpack.c.bf16 %v721, %v720
        %v744 = vpack.c.bf16 %v723, %v722
        %v745 = vpack.c.bf16 %v725, %v724
        %v746 = vpack.c.bf16 %v727, %v726
        %v747 = vpack.c.bf16 %v729, %v728
        %v748 = vpack.c.bf16 %v731, %v730
        %v749 = vpack.c.bf16 %v733, %v732
        %750 = vst.msk [vmem:[#allocation3] sm:$0xff] %vm627, %v734
        %751 = vst.msk [vmem:[#allocation3 + $0x8] sm:$0xff] %vm627, %v735
        %752 = vst.msk [vmem:[#allocation3 + $0x10] sm:$0xff] %vm627, %v736
        %753 = vst.msk [vmem:[#allocation3 + $0x18] sm:$0xff] %vm627, %v737
        %754 = vst.msk [vmem:[#allocation3 + $0x20] sm:$0xff] %vm627, %v738
        %755 = vst.msk [vmem:[#allocation3 + $0x28] sm:$0xff] %vm627, %v739
        %756 = vst.msk [vmem:[#allocation3 + $0x30] sm:$0xff] %vm627, %v740
        %757 = vst.msk [vmem:[#allocation3 + $0x38] sm:$0xff] %vm627, %v741
        %758 = vst.msk [vmem:[#allocation3 + $0x40] sm:$0xff] %vm627, %v742
        %759 = vst.msk [vmem:[#allocation3 + $0x48] sm:$0xff] %vm627, %v743
        %760 = vst.msk [vmem:[#allocation3 + $0x50] sm:$0xff] %vm627, %v744
        %761 = vst.msk [vmem:[#allocation3 + $0x58] sm:$0xff] %vm627, %v745
        %762 = vst.msk [vmem:[#allocation3 + $0x60] sm:$0xff] %vm627, %v746
        %763 = vst.msk [vmem:[#allocation3 + $0x68] sm:$0xff] %vm627, %v747
        %764 = vst.msk [vmem:[#allocation3 + $0x70] sm:$0xff] %vm627, %v748
        %765 = vst.msk [vmem:[#allocation3 + $0x78] sm:$0xff] %vm627, %v749
        %v766 = vld [vmem:[#allocation2 + $0x1] sm:$0xff]
        %v767 = vld [vmem:[#allocation2 + $0x9] sm:$0xff]
        %v768 = vld [vmem:[#allocation2 + $0x19] sm:$0xff]
        %v769 = vld [vmem:[#allocation2 + $0x21] sm:$0xff]
        %v770 = vld [vmem:[#allocation2 + $0x31] sm:$0xff]
        %v771 = vld [vmem:[#allocation2 + $0x39] sm:$0xff]
        %v772 = vld [vmem:[#allocation2 + $0x49] sm:$0xff]
        %v773 = vld [vmem:[#allocation2 + $0x51] sm:$0xff]
        %v774 = vld [vmem:[#allocation2 + $0x61] sm:$0xff]
        %v775 = vld [vmem:[#allocation2 + $0x69] sm:$0xff]
        %v776 = vld [vmem:[#allocation2 + $0x79] sm:$0xff]
        %v777 = vld [vmem:[#allocation2 + $0x81] sm:$0xff]
        %v778 = vld [vmem:[#allocation2 + $0x91] sm:$0xff]
        %v779 = vld [vmem:[#allocation2 + $0x99] sm:$0xff]
        %v780 = vld [vmem:[#allocation2 + $0xa9] sm:$0xff]
        %v781 = vld [vmem:[#allocation2 + $0xb1] sm:$0xff]
        %v782 = vld [vmem:[#allocation2 + $0xc1] sm:$0xff]
        %v783 = vld [vmem:[#allocation2 + $0xc9] sm:$0xff]
        %v784 = vld [vmem:[#allocation2 + $0xd9] sm:$0xff]
        %v785 = vld [vmem:[#allocation2 + $0xe1] sm:$0xff]
        %v786 = vld [vmem:[#allocation2 + $0xf1] sm:$0xff]
        %v787 = vld [vmem:[#allocation2 + $0xf9] sm:$0xff]
        %v788 = vld [vmem:[#allocation2 + $0x109] sm:$0xff]
        %v789 = vld [vmem:[#allocation2 + $0x111] sm:$0xff]
        %v790 = vld [vmem:[#allocation2 + $0x121] sm:$0xff]
        %v791 = vld [vmem:[#allocation2 + $0x129] sm:$0xff]
        %v792 = vld [vmem:[#allocation2 + $0x139] sm:$0xff]
        %v793 = vld [vmem:[#allocation2 + $0x141] sm:$0xff]
        %v794 = vld [vmem:[#allocation2 + $0x151] sm:$0xff]
        %v795 = vld [vmem:[#allocation2 + $0x159] sm:$0xff]
        %v796 = vld [vmem:[#allocation2 + $0x169] sm:$0xff]
        %v797 = vld [vmem:[#allocation2 + $0x171] sm:$0xff]
        %v798 = vpack.c.bf16 %v767, %v766
        %v799 = vpack.c.bf16 %v769, %v768
        %v800 = vpack.c.bf16 %v771, %v770
        %v801 = vpack.c.bf16 %v773, %v772
        %v802 = vpack.c.bf16 %v775, %v774
        %v803 = vpack.c.bf16 %v777, %v776
        %v804 = vpack.c.bf16 %v779, %v778
        %v805 = vpack.c.bf16 %v781, %v780
        %v806 = vpack.c.bf16 %v783, %v782
        %v807 = vpack.c.bf16 %v785, %v784
        %v808 = vpack.c.bf16 %v787, %v786
        %v809 = vpack.c.bf16 %v789, %v788
        %v810 = vpack.c.bf16 %v791, %v790
        %v811 = vpack.c.bf16 %v793, %v792
        %v812 = vpack.c.bf16 %v795, %v794
        %v813 = vpack.c.bf16 %v797, %v796
        %830 = vrot.lane.b32.xlu0 %v798, 8
        %v831 = vpop.permute.xlu0 %830
        %832 = vrot.lane.b32.xlu0 %v799, 8
        %v833 = vpop.permute.xlu0 %832
        %834 = vrot.lane.b32.xlu0 %v800, 8
        %v835 = vpop.permute.xlu0 %834
        %836 = vrot.lane.b32.xlu0 %v801, 8
        %v837 = vpop.permute.xlu0 %836
        %838 = vrot.lane.b32.xlu0 %v802, 8
        %v839 = vpop.permute.xlu0 %838
        %840 = vrot.lane.b32.xlu0 %v803, 8
        %v841 = vpop.permute.xlu0 %840
        %842 = vrot.lane.b32.xlu0 %v804, 8
        %v843 = vpop.permute.xlu0 %842
        %844 = vrot.lane.b32.xlu0 %v805, 8
        %v845 = vpop.permute.xlu0 %844
        %846 = vrot.lane.b32.xlu0 %v806, 8
        %v847 = vpop.permute.xlu0 %846
        %848 = vrot.lane.b32.xlu0 %v807, 8
        %v849 = vpop.permute.xlu0 %848
        %850 = vrot.lane.b32.xlu0 %v808, 8
        %v851 = vpop.permute.xlu0 %850
        %852 = vrot.lane.b32.xlu0 %v809, 8
        %v853 = vpop.permute.xlu0 %852
        %854 = vrot.lane.b32.xlu0 %v810, 8
        %v855 = vpop.permute.xlu0 %854
        %856 = vrot.lane.b32.xlu0 %v811, 8
        %v857 = vpop.permute.xlu0 %856
        %858 = vrot.lane.b32.xlu0 %v812, 8
        %v859 = vpop.permute.xlu0 %858
        %860 = vrot.lane.b32.xlu0 %v813, 8
        %v861 = vpop.permute.xlu0 %860
        %vm878 = vcmask 130112
        %879 = vst.msk [vmem:[#allocation3] sm:$0xff] %vm878, %v831
        %880 = vst.msk [vmem:[#allocation3 + $0x8] sm:$0xff] %vm878, %v833
        %881 = vst.msk [vmem:[#allocation3 + $0x10] sm:$0xff] %vm878, %v835
        %882 = vst.msk [vmem:[#allocation3 + $0x18] sm:$0xff] %vm878, %v837
        %883 = vst.msk [vmem:[#allocation3 + $0x20] sm:$0xff] %vm878, %v839
        %884 = vst.msk [vmem:[#allocation3 + $0x28] sm:$0xff] %vm878, %v841
        %885 = vst.msk [vmem:[#allocation3 + $0x30] sm:$0xff] %vm878, %v843
        %886 = vst.msk [vmem:[#allocation3 + $0x38] sm:$0xff] %vm878, %v845
        %887 = vst.msk [vmem:[#allocation3 + $0x40] sm:$0xff] %vm878, %v847
        %888 = vst.msk [vmem:[#allocation3 + $0x48] sm:$0xff] %vm878, %v849
        %889 = vst.msk [vmem:[#allocation3 + $0x50] sm:$0xff] %vm878, %v851
        %890 = vst.msk [vmem:[#allocation3 + $0x58] sm:$0xff] %vm878, %v853
        %891 = vst.msk [vmem:[#allocation3 + $0x60] sm:$0xff] %vm878, %v855
        %892 = vst.msk [vmem:[#allocation3 + $0x68] sm:$0xff] %vm878, %v857
        %893 = vst.msk [vmem:[#allocation3 + $0x70] sm:$0xff] %vm878, %v859
        %894 = vst.msk [vmem:[#allocation3 + $0x78] sm:$0xff] %vm878, %v861
        %v895 = vld [vmem:[#allocation2 + $0x2] sm:$0xff]
        %v896 = vld [vmem:[#allocation2 + $0xa] sm:$0xff]
        %v897 = vld [vmem:[#allocation2 + $0x1a] sm:$0xff]
        %v898 = vld [vmem:[#allocation2 + $0x22] sm:$0xff]
        %v899 = vld [vmem:[#allocation2 + $0x32] sm:$0xff]
        %v900 = vld [vmem:[#allocation2 + $0x3a] sm:$0xff]
        %v901 = vld [vmem:[#allocation2 + $0x4a] sm:$0xff]
        %v902 = vld [vmem:[#allocation2 + $0x52] sm:$0xff]
        %v903 = vld [vmem:[#allocation2 + $0x62] sm:$0xff]
        %v904 = vld [vmem:[#allocation2 + $0x6a] sm:$0xff]
        %v905 = vld [vmem:[#allocation2 + $0x7a] sm:$0xff]
        %v906 = vld [vmem:[#allocation2 + $0x82] sm:$0xff]
        %v907 = vld [vmem:[#allocation2 + $0x92] sm:$0xff]
        %v908 = vld [vmem:[#allocation2 + $0x9a] sm:$0xff]
        %v909 = vld [vmem:[#allocation2 + $0xaa] sm:$0xff]
        %v910 = vld [vmem:[#allocation2 + $0xb2] sm:$0xff]
        %v911 = vld [vmem:[#allocation2 + $0xc2] sm:$0xff]
        %v912 = vld [vmem:[#allocation2 + $0xca] sm:$0xff]
        %v913 = vld [vmem:[#allocation2 + $0xda] sm:$0xff]
        %v914 = vld [vmem:[#allocation2 + $0xe2] sm:$0xff]
        %v915 = vld [vmem:[#allocation2 + $0xf2] sm:$0xff]
        %v916 = vld [vmem:[#allocation2 + $0xfa] sm:$0xff]
        %v917 = vld [vmem:[#allocation2 + $0x10a] sm:$0xff]
        %v918 = vld [vmem:[#allocation2 + $0x112] sm:$0xff]
        %v919 = vld [vmem:[#allocation2 + $0x122] sm:$0xff]
        %v920 = vld [vmem:[#allocation2 + $0x12a] sm:$0xff]
        %v921 = vld [vmem:[#allocation2 + $0x13a] sm:$0xff]
        %v922 = vld [vmem:[#allocation2 + $0x142] sm:$0xff]
        %v923 = vld [vmem:[#allocation2 + $0x152] sm:$0xff]
        %v924 = vld [vmem:[#allocation2 + $0x15a] sm:$0xff]
        %v925 = vld [vmem:[#allocation2 + $0x16a] sm:$0xff]
        %v926 = vld [vmem:[#allocation2 + $0x172] sm:$0xff]
        %v927 = vpack.c.bf16 %v896, %v895
        %v928 = vpack.c.bf16 %v898, %v897
        %v929 = vpack.c.bf16 %v900, %v899
        %v930 = vpack.c.bf16 %v902, %v901
        %v931 = vpack.c.bf16 %v904, %v903
        %v932 = vpack.c.bf16 %v906, %v905
        %v933 = vpack.c.bf16 %v908, %v907
        %v934 = vpack.c.bf16 %v910, %v909
        %v935 = vpack.c.bf16 %v912, %v911
        %v936 = vpack.c.bf16 %v914, %v913
        %v937 = vpack.c.bf16 %v916, %v915
        %v938 = vpack.c.bf16 %v918, %v917
        %v939 = vpack.c.bf16 %v920, %v919
        %v940 = vpack.c.bf16 %v922, %v921
        %v941 = vpack.c.bf16 %v924, %v923
        %v942 = vpack.c.bf16 %v926, %v925
        %959 = vrot.lane.b32.xlu0 %v927, 16
        %v960 = vpop.permute.xlu0 %959
        %961 = vrot.lane.b32.xlu0 %v928, 16
        %v962 = vpop.permute.xlu0 %961
        %963 = vrot.lane.b32.xlu0 %v929, 16
        %v964 = vpop.permute.xlu0 %963
        %965 = vrot.lane.b32.xlu0 %v930, 16
        %v966 = vpop.permute.xlu0 %965
        %967 = vrot.lane.b32.xlu0 %v931, 16
        %v968 = vpop.permute.xlu0 %967
        %969 = vrot.lane.b32.xlu0 %v932, 16
        %v970 = vpop.permute.xlu0 %969
        %971 = vrot.lane.b32.xlu0 %v933, 16
        %v972 = vpop.permute.xlu0 %971
        %973 = vrot.lane.b32.xlu0 %v934, 16
        %v974 = vpop.permute.xlu0 %973
        %975 = vrot.lane.b32.xlu0 %v935, 16
        %v976 = vpop.permute.xlu0 %975
        %977 = vrot.lane.b32.xlu0 %v936, 16
        %v978 = vpop.permute.xlu0 %977
        %979 = vrot.lane.b32.xlu0 %v937, 16
        %v980 = vpop.permute.xlu0 %979
        %981 = vrot.lane.b32.xlu0 %v938, 16
        %v982 = vpop.permute.xlu0 %981
        %983 = vrot.lane.b32.xlu0 %v939, 16
        %v984 = vpop.permute.xlu0 %983
        %985 = vrot.lane.b32.xlu0 %v940, 16
        %v986 = vpop.permute.xlu0 %985
        %987 = vrot.lane.b32.xlu0 %v941, 16
        %v988 = vpop.permute.xlu0 %987
        %989 = vrot.lane.b32.xlu0 %v942, 16
        %v990 = vpop.permute.xlu0 %989
        %vm1007 = vcmask 195712
        %1008 = vst.msk [vmem:[#allocation3] sm:$0xff] %vm1007, %v960
        %1009 = vst.msk [vmem:[#allocation3 + $0x8] sm:$0xff] %vm1007, %v962
        %1010 = vst.msk [vmem:[#allocation3 + $0x10] sm:$0xff] %vm1007, %v964
        %1011 = vst.msk [vmem:[#allocation3 + $0x18] sm:$0xff] %vm1007, %v966
        %1012 = vst.msk [vmem:[#allocation3 + $0x20] sm:$0xff] %vm1007, %v968
        %1013 = vst.msk [vmem:[#allocation3 + $0x28] sm:$0xff] %vm1007, %v970
        %1014 = vst.msk [vmem:[#allocation3 + $0x30] sm:$0xff] %vm1007, %v972
        %1015 = vst.msk [vmem:[#allocation3 + $0x38] sm:$0xff] %vm1007, %v974
        %1016 = vst.msk [vmem:[#allocation3 + $0x40] sm:$0xff] %vm1007, %v976
        %1017 = vst.msk [vmem:[#allocation3 + $0x48] sm:$0xff] %vm1007, %v978
        %1018 = vst.msk [vmem:[#allocation3 + $0x50] sm:$0xff] %vm1007, %v980
        %1019 = vst.msk [vmem:[#allocation3 + $0x58] sm:$0xff] %vm1007, %v982
        %1020 = vst.msk [vmem:[#allocation3 + $0x60] sm:$0xff] %vm1007, %v984
        %1021 = vst.msk [vmem:[#allocation3 + $0x68] sm:$0xff] %vm1007, %v986
        %1022 = vst.msk [vmem:[#allocation3 + $0x70] sm:$0xff] %vm1007, %v988
        %1023 = vst.msk [vmem:[#allocation3 + $0x78] sm:$0xff] %vm1007, %v990
        %v1024 = vld [vmem:[%s636] sm:$0xff]
        %v1025 = vld [vmem:[%s636 + $0x8] sm:$0xff]
        %v1026 = vld [vmem:[%s636 + $0x18] sm:$0xff]
        %v1027 = vld [vmem:[%s636 + $0x20] sm:$0xff]
        %v1028 = vld [vmem:[%s636 + $0x30] sm:$0xff]
        %v1029 = vld [vmem:[%s636 + $0x38] sm:$0xff]
        %v1030 = vld [vmem:[%s636 + $0x48] sm:$0xff]
        %v1031 = vld [vmem:[%s636 + $0x50] sm:$0xff]
        %v1032 = vld [vmem:[%s636 + $0x60] sm:$0xff]
        %v1033 = vld [vmem:[%s636 + $0x68] sm:$0xff]
        %v1034 = vld [vmem:[%s636 + $0x78] sm:$0xff]
        %v1035 = vld [vmem:[%s636 + $0x80] sm:$0xff]
        %v1036 = vld [vmem:[%s636 + $0x90] sm:$0xff]
        %v1037 = vld [vmem:[%s636 + $0x98] sm:$0xff]
        %v1038 = vld [vmem:[%s636 + $0xa8] sm:$0xff]
        %v1039 = vld [vmem:[%s636 + $0xb0] sm:$0xff]
        %v1040 = vld [vmem:[%s636 + $0xc0] sm:$0xff]
        %v1041 = vld [vmem:[%s636 + $0xc8] sm:$0xff]
        %v1042 = vld [vmem:[%s636 + $0xd8] sm:$0xff]
        %v1043 = vld [vmem:[%s636 + $0xe0] sm:$0xff]
        %v1044 = vld [vmem:[%s636 + $0xf0] sm:$0xff]
        %v1045 = vld [vmem:[%s636 + $0xf8] sm:$0xff]
        %v1046 = vld [vmem:[%s636 + $0x108] sm:$0xff]
        %v1047 = vld [vmem:[%s636 + $0x110] sm:$0xff]
        %v1048 = vld [vmem:[%s636 + $0x120] sm:$0xff]
        %v1049 = vld [vmem:[%s636 + $0x128] sm:$0xff]
        %v1050 = vld [vmem:[%s636 + $0x138] sm:$0xff]
        %v1051 = vld [vmem:[%s636 + $0x140] sm:$0xff]
        %v1052 = vld [vmem:[%s636 + $0x150] sm:$0xff]
        %v1053 = vld [vmem:[%s636 + $0x158] sm:$0xff]
        %v1054 = vld [vmem:[%s636 + $0x168] sm:$0xff]
        %v1055 = vld [vmem:[%s636 + $0x170] sm:$0xff]
        %v1056 = vpack.c.bf16 %v1025, %v1024
        %v1057 = vpack.c.bf16 %v1027, %v1026
        %v1058 = vpack.c.bf16 %v1029, %v1028
        %v1059 = vpack.c.bf16 %v1031, %v1030
        %v1060 = vpack.c.bf16 %v1033, %v1032
        %v1061 = vpack.c.bf16 %v1035, %v1034
        %v1062 = vpack.c.bf16 %v1037, %v1036
        %v1063 = vpack.c.bf16 %v1039, %v1038
        %v1064 = vpack.c.bf16 %v1041, %v1040
        %v1065 = vpack.c.bf16 %v1043, %v1042
        %v1066 = vpack.c.bf16 %v1045, %v1044
        %v1067 = vpack.c.bf16 %v1047, %v1046
        %v1068 = vpack.c.bf16 %v1049, %v1048
        %v1069 = vpack.c.bf16 %v1051, %v1050
        %v1070 = vpack.c.bf16 %v1053, %v1052
        %v1071 = vpack.c.bf16 %v1055, %v1054
        %1088 = vrot.lane.b32.xlu0 %v1056, 24
        %v1089 = vpop.permute.xlu0 %1088
        %1090 = vrot.lane.b32.xlu0 %v1057, 24
        %v1091 = vpop.permute.xlu0 %1090
        %1092 = vrot.lane.b32.xlu0 %v1058, 24
        %v1093 = vpop.permute.xlu0 %1092
        %1094 = vrot.lane.b32.xlu0 %v1059, 24
        %v1095 = vpop.permute.xlu0 %1094
        %1096 = vrot.lane.b32.xlu0 %v1060, 24
        %v1097 = vpop.permute.xlu0 %1096
        %1098 = vrot.lane.b32.xlu0 %v1061, 24
        %v1099 = vpop.permute.xlu0 %1098
        %1100 = vrot.lane.b32.xlu0 %v1062, 24
        %v1101 = vpop.permute.xlu0 %1100
        %1102 = vrot.lane.b32.xlu0 %v1063, 24
        %v1103 = vpop.permute.xlu0 %1102
        %1104 = vrot.lane.b32.xlu0 %v1064, 24
        %v1105 = vpop.permute.xlu0 %1104
        %1106 = vrot.lane.b32.xlu0 %v1065, 24
        %v1107 = vpop.permute.xlu0 %1106
        %1108 = vrot.lane.b32.xlu0 %v1066, 24
        %v1109 = vpop.permute.xlu0 %1108
        %1110 = vrot.lane.b32.xlu0 %v1067, 24
        %v1111 = vpop.permute.xlu0 %1110
        %1112 = vrot.lane.b32.xlu0 %v1068, 24
        %v1113 = vpop.permute.xlu0 %1112
        %1114 = vrot.lane.b32.xlu0 %v1069, 24
        %v1115 = vpop.permute.xlu0 %1114
        %1116 = vrot.lane.b32.xlu0 %v1070, 24
        %v1117 = vpop.permute.xlu0 %1116
        %1118 = vrot.lane.b32.xlu0 %v1071, 24
        %v1119 = vpop.permute.xlu0 %1118
        %vm1136 = vcmask 261312
        %1137 = vst.msk [vmem:[#allocation3] sm:$0xff] %vm1136, %v1089
        %1138 = vst.msk [vmem:[#allocation3 + $0x8] sm:$0xff] %vm1136, %v1091
        %1139 = vst.msk [vmem:[#allocation3 + $0x10] sm:$0xff] %vm1136, %v1093
        %1140 = vst.msk [vmem:[#allocation3 + $0x18] sm:$0xff] %vm1136, %v1095
        %1141 = vst.msk [vmem:[#allocation3 + $0x20] sm:$0xff] %vm1136, %v1097
        %1142 = vst.msk [vmem:[#allocation3 + $0x28] sm:$0xff] %vm1136, %v1099
        %1143 = vst.msk [vmem:[#allocation3 + $0x30] sm:$0xff] %vm1136, %v1101
        %1144 = vst.msk [vmem:[#allocation3 + $0x38] sm:$0xff] %vm1136, %v1103
        %1145 = vst.msk [vmem:[#allocation3 + $0x40] sm:$0xff] %vm1136, %v1105
        %1146 = vst.msk [vmem:[#allocation3 + $0x48] sm:$0xff] %vm1136, %v1107
        %1147 = vst.msk [vmem:[#allocation3 + $0x50] sm:$0xff] %vm1136, %v1109
        %1148 = vst.msk [vmem:[#allocation3 + $0x58] sm:$0xff] %vm1136, %v1111
        %1149 = vst.msk [vmem:[#allocation3 + $0x60] sm:$0xff] %vm1136, %v1113
        %1150 = vst.msk [vmem:[#allocation3 + $0x68] sm:$0xff] %vm1136, %v1115
        %1151 = vst.msk [vmem:[#allocation3 + $0x70] sm:$0xff] %vm1136, %v1117
        %1152 = vst.msk [vmem:[#allocation3 + $0x78] sm:$0xff] %vm1136, %v1119
        %1169 = vrot.lane.b32.xlu0 %v611, 32
        %v1170 = vpop.permute.xlu0 %1169
        %1171 = vrot.lane.b32.xlu0 %v612, 32
        %v1172 = vpop.permute.xlu0 %1171
        %1173 = vrot.lane.b32.xlu0 %v613, 32
        %v1174 = vpop.permute.xlu0 %1173
        %1175 = vrot.lane.b32.xlu0 %v614, 32
        %v1176 = vpop.permute.xlu0 %1175
        %1177 = vrot.lane.b32.xlu0 %v615, 32
        %v1178 = vpop.permute.xlu0 %1177
        %1179 = vrot.lane.b32.xlu0 %v616, 32
        %v1180 = vpop.permute.xlu0 %1179
        %1181 = vrot.lane.b32.xlu0 %v617, 32
        %v1182 = vpop.permute.xlu0 %1181
        %1183 = vrot.lane.b32.xlu0 %v618, 32
        %v1184 = vpop.permute.xlu0 %1183
        %1185 = vrot.lane.b32.xlu0 %v619, 32
        %v1186 = vpop.permute.xlu0 %1185
        %1187 = vrot.lane.b32.xlu0 %v620, 32
        %v1188 = vpop.permute.xlu0 %1187
        %1189 = vrot.lane.b32.xlu0 %v621, 32
        %v1190 = vpop.permute.xlu0 %1189
        %1191 = vrot.lane.b32.xlu0 %v622, 32
        %v1192 = vpop.permute.xlu0 %1191
        %1193 = vrot.lane.b32.xlu0 %v623, 32
        %v1194 = vpop.permute.xlu0 %1193
        %1195 = vrot.lane.b32.xlu0 %v624, 32
        %v1196 = vpop.permute.xlu0 %1195
        %1197 = vrot.lane.b32.xlu0 %v625, 32
        %v1198 = vpop.permute.xlu0 %1197
        %1199 = vrot.lane.b32.xlu0 %v626, 32
        %v1200 = vpop.permute.xlu0 %1199
        %vm1217 = vcmask 326912
        %1218 = vst.msk [vmem:[#allocation3] sm:$0xff] %vm1217, %v1170
        %1219 = vst.msk [vmem:[#allocation3 + $0x8] sm:$0xff] %vm1217, %v1172
        %1220 = vst.msk [vmem:[#allocation3 + $0x10] sm:$0xff] %vm1217, %v1174
        %1221 = vst.msk [vmem:[#allocation3 + $0x18] sm:$0xff] %vm1217, %v1176
        %1222 = vst.msk [vmem:[#allocation3 + $0x20] sm:$0xff] %vm1217, %v1178
        %1223 = vst.msk [vmem:[#allocation3 + $0x28] sm:$0xff] %vm1217, %v1180
        %1224 = vst.msk [vmem:[#allocation3 + $0x30] sm:$0xff] %vm1217, %v1182
        %1225 = vst.msk [vmem:[#allocation3 + $0x38] sm:$0xff] %vm1217, %v1184
        %1226 = vst.msk [vmem:[#allocation3 + $0x40] sm:$0xff] %vm1217, %v1186
        %1227 = vst.msk [vmem:[#allocation3 + $0x48] sm:$0xff] %vm1217, %v1188
        %1228 = vst.msk [vmem:[#allocation3 + $0x50] sm:$0xff] %vm1217, %v1190
        %1229 = vst.msk [vmem:[#allocation3 + $0x58] sm:$0xff] %vm1217, %v1192
        %1230 = vst.msk [vmem:[#allocation3 + $0x60] sm:$0xff] %vm1217, %v1194
        %1231 = vst.msk [vmem:[#allocation3 + $0x68] sm:$0xff] %vm1217, %v1196
        %1232 = vst.msk [vmem:[#allocation3 + $0x70] sm:$0xff] %vm1217, %v1198
        %1233 = vst.msk [vmem:[#allocation3 + $0x78] sm:$0xff] %vm1217, %v1200
        %v1234 = vld [vmem:[%s636 + $0x2] sm:$0xff]
        %v1235 = vld [vmem:[%s636 + $0xa] sm:$0xff]
        %v1236 = vld [vmem:[%s636 + $0x1a] sm:$0xff]
        %v1237 = vld [vmem:[%s636 + $0x22] sm:$0xff]
        %v1238 = vld [vmem:[%s636 + $0x32] sm:$0xff]
        %v1239 = vld [vmem:[%s636 + $0x3a] sm:$0xff]
        %v1240 = vld [vmem:[%s636 + $0x4a] sm:$0xff]
        %v1241 = vld [vmem:[%s636 + $0x52] sm:$0xff]
        %v1242 = vld [vmem:[%s636 + $0x62] sm:$0xff]
        %v1243 = vld [vmem:[%s636 + $0x6a] sm:$0xff]
        %v1244 = vld [vmem:[%s636 + $0x7a] sm:$0xff]
        %v1245 = vld [vmem:[%s636 + $0x82] sm:$0xff]
        %v1246 = vld [vmem:[%s636 + $0x92] sm:$0xff]
        %v1247 = vld [vmem:[%s636 + $0x9a] sm:$0xff]
        %v1248 = vld [vmem:[%s636 + $0xaa] sm:$0xff]
        %v1249 = vld [vmem:[%s636 + $0xb2] sm:$0xff]
        %v1250 = vld [vmem:[%s636 + $0xc2] sm:$0xff]
        %v1251 = vld [vmem:[%s636 + $0xca] sm:$0xff]
        %v1252 = vld [vmem:[%s636 + $0xda] sm:$0xff]
        %v1253 = vld [vmem:[%s636 + $0xe2] sm:$0xff]
        %v1254 = vld [vmem:[%s636 + $0xf2] sm:$0xff]
        %v1255 = vld [vmem:[%s636 + $0xfa] sm:$0xff]
        %v1256 = vld [vmem:[%s636 + $0x10a] sm:$0xff]
        %v1257 = vld [vmem:[%s636 + $0x112] sm:$0xff]
        %v1258 = vld [vmem:[%s636 + $0x122] sm:$0xff]
        %v1259 = vld [vmem:[%s636 + $0x12a] sm:$0xff]
        %v1260 = vld [vmem:[%s636 + $0x13a] sm:$0xff]
        %v1261 = vld [vmem:[%s636 + $0x142] sm:$0xff]
        %v1262 = vld [vmem:[%s636 + $0x152] sm:$0xff]
        %v1263 = vld [vmem:[%s636 + $0x15a] sm:$0xff]
        %v1264 = vld [vmem:[%s636 + $0x16a] sm:$0xff]
        %v1265 = vld [vmem:[%s636 + $0x172] sm:$0xff]
        %v1266 = vpack.c.bf16 %v1235, %v1234
        %v1267 = vpack.c.bf16 %v1237, %v1236
        %v1268 = vpack.c.bf16 %v1239, %v1238
        %v1269 = vpack.c.bf16 %v1241, %v1240
        %v1270 = vpack.c.bf16 %v1243, %v1242
        %v1271 = vpack.c.bf16 %v1245, %v1244
        %v1272 = vpack.c.bf16 %v1247, %v1246
        %v1273 = vpack.c.bf16 %v1249, %v1248
        %v1274 = vpack.c.bf16 %v1251, %v1250
        %v1275 = vpack.c.bf16 %v1253, %v1252
        %v1276 = vpack.c.bf16 %v1255, %v1254
        %v1277 = vpack.c.bf16 %v1257, %v1256
        %v1278 = vpack.c.bf16 %v1259, %v1258
        %v1279 = vpack.c.bf16 %v1261, %v1260
        %v1280 = vpack.c.bf16 %v1263, %v1262
        %v1281 = vpack.c.bf16 %v1265, %v1264
        %1298 = vrot.lane.b32.xlu0 %v1266, 40
        %v1299 = vpop.permute.xlu0 %1298
        %1300 = vrot.lane.b32.xlu0 %v1267, 40
        %v1301 = vpop.permute.xlu0 %1300
        %1302 = vrot.lane.b32.xlu0 %v1268, 40
        %v1303 = vpop.permute.xlu0 %1302
        %1304 = vrot.lane.b32.xlu0 %v1269, 40
        %v1305 = vpop.permute.xlu0 %1304
        %1306 = vrot.lane.b32.xlu0 %v1270, 40
        %v1307 = vpop.permute.xlu0 %1306
        %1308 = vrot.lane.b32.xlu0 %v1271, 40
        %v1309 = vpop.permute.xlu0 %1308
        %1310 = vrot.lane.b32.xlu0 %v1272, 40
        %v1311 = vpop.permute.xlu0 %1310
        %1312 = vrot.lane.b32.xlu0 %v1273, 40
        %v1313 = vpop.permute.xlu0 %1312
        %1314 = vrot.lane.b32.xlu0 %v1274, 40
        %v1315 = vpop.permute.xlu0 %1314
        %1316 = vrot.lane.b32.xlu0 %v1275, 40
        %v1317 = vpop.permute.xlu0 %1316
        %1318 = vrot.lane.b32.xlu0 %v1276, 40
        %v1319 = vpop.permute.xlu0 %1318
        %1320 = vrot.lane.b32.xlu0 %v1277, 40
        %v1321 = vpop.permute.xlu0 %1320
        %1322 = vrot.lane.b32.xlu0 %v1278, 40
        %v1323 = vpop.permute.xlu0 %1322
        %1324 = vrot.lane.b32.xlu0 %v1279, 40
        %v1325 = vpop.permute.xlu0 %1324
        %1326 = vrot.lane.b32.xlu0 %v1280, 40
        %v1327 = vpop.permute.xlu0 %1326
        %1328 = vrot.lane.b32.xlu0 %v1281, 40
        %v1329 = vpop.permute.xlu0 %1328
        %vm1346 = vcmask 392512
        %1347 = vst.msk [vmem:[#allocation3] sm:$0xff] %vm1346, %v1299
        %1348 = vst.msk [vmem:[#allocation3 + $0x8] sm:$0xff] %vm1346, %v1301
        %1349 = vst.msk [vmem:[#allocation3 + $0x10] sm:$0xff] %vm1346, %v1303
        %1350 = vst.msk [vmem:[#allocation3 + $0x18] sm:$0xff] %vm1346, %v1305
        %1351 = vst.msk [vmem:[#allocation3 + $0x20] sm:$0xff] %vm1346, %v1307
        %1352 = vst.msk [vmem:[#allocation3 + $0x28] sm:$0xff] %vm1346, %v1309
        %1353 = vst.msk [vmem:[#allocation3 + $0x30] sm:$0xff] %vm1346, %v1311
        %1354 = vst.msk [vmem:[#allocation3 + $0x38] sm:$0xff] %vm1346, %v1313
        %1355 = vst.msk [vmem:[#allocation3 + $0x40] sm:$0xff] %vm1346, %v1315
        %1356 = vst.msk [vmem:[#allocation3 + $0x48] sm:$0xff] %vm1346, %v1317
        %1357 = vst.msk [vmem:[#allocation3 + $0x50] sm:$0xff] %vm1346, %v1319
        %1358 = vst.msk [vmem:[#allocation3 + $0x58] sm:$0xff] %vm1346, %v1321
        %1359 = vst.msk [vmem:[#allocation3 + $0x60] sm:$0xff] %vm1346, %v1323
        %1360 = vst.msk [vmem:[#allocation3 + $0x68] sm:$0xff] %vm1346, %v1325
        %1361 = vst.msk [vmem:[#allocation3 + $0x70] sm:$0xff] %vm1346, %v1327
        %1362 = vst.msk [vmem:[#allocation3 + $0x78] sm:$0xff] %vm1346, %v1329
        %s1363 = scalar_lea.vmem [#allocation2], 48
        %v1364 = vld [vmem:[%s1363] sm:$0xff]
        %v1365 = vld [vmem:[%s1363 + $0x8] sm:$0xff]
        %v1366 = vld [vmem:[%s1363 + $0x18] sm:$0xff]
        %v1367 = vld [vmem:[%s1363 + $0x20] sm:$0xff]
        %v1368 = vld [vmem:[%s1363 + $0x30] sm:$0xff]
        %v1369 = vld [vmem:[%s1363 + $0x38] sm:$0xff]
        %v1370 = vld [vmem:[%s1363 + $0x48] sm:$0xff]
        %v1371 = vld [vmem:[%s1363 + $0x50] sm:$0xff]
        %v1372 = vld [vmem:[%s1363 + $0x60] sm:$0xff]
        %v1373 = vld [vmem:[%s1363 + $0x68] sm:$0xff]
        %v1374 = vld [vmem:[%s1363 + $0x78] sm:$0xff]
        %v1375 = vld [vmem:[%s1363 + $0x80] sm:$0xff]
        %v1376 = vld [vmem:[%s1363 + $0x90] sm:$0xff]
        %v1377 = vld [vmem:[%s1363 + $0x98] sm:$0xff]
        %v1378 = vld [vmem:[%s1363 + $0xa8] sm:$0xff]
        %v1379 = vld [vmem:[%s1363 + $0xb0] sm:$0xff]
        %v1380 = vld [vmem:[%s1363 + $0xc0] sm:$0xff]
        %v1381 = vld [vmem:[%s1363 + $0xc8] sm:$0xff]
        %v1382 = vld [vmem:[%s1363 + $0xd8] sm:$0xff]
        %v1383 = vld [vmem:[%s1363 + $0xe0] sm:$0xff]
        %v1384 = vld [vmem:[%s1363 + $0xf0] sm:$0xff]
        %v1385 = vld [vmem:[%s1363 + $0xf8] sm:$0xff]
        %v1386 = vld [vmem:[%s1363 + $0x108] sm:$0xff]
        %v1387 = vld [vmem:[%s1363 + $0x110] sm:$0xff]
        %v1388 = vld [vmem:[%s1363 + $0x120] sm:$0xff]
        %v1389 = vld [vmem:[%s1363 + $0x128] sm:$0xff]
        %v1390 = vld [vmem:[%s1363 + $0x138] sm:$0xff]
        %v1391 = vld [vmem:[%s1363 + $0x140] sm:$0xff]
        %v1392 = vld [vmem:[%s1363 + $0x150] sm:$0xff]
        %v1393 = vld [vmem:[%s1363 + $0x158] sm:$0xff]
        %v1394 = vld [vmem:[%s1363 + $0x168] sm:$0xff]
        %v1395 = vld [vmem:[%s1363 + $0x170] sm:$0xff]
        %v1396 = vpack.c.bf16 %v1365, %v1364
        %v1397 = vpack.c.bf16 %v1367, %v1366
        %v1398 = vpack.c.bf16 %v1369, %v1368
        %v1399 = vpack.c.bf16 %v1371, %v1370
        %v1400 = vpack.c.bf16 %v1373, %v1372
        %v1401 = vpack.c.bf16 %v1375, %v1374
        %v1402 = vpack.c.bf16 %v1377, %v1376
        %v1403 = vpack.c.bf16 %v1379, %v1378
        %v1404 = vpack.c.bf16 %v1381, %v1380
        %v1405 = vpack.c.bf16 %v1383, %v1382
        %v1406 = vpack.c.bf16 %v1385, %v1384
        %v1407 = vpack.c.bf16 %v1387, %v1386
        %v1408 = vpack.c.bf16 %v1389, %v1388
        %v1409 = vpack.c.bf16 %v1391, %v1390
        %v1410 = vpack.c.bf16 %v1393, %v1392
        %v1411 = vpack.c.bf16 %v1395, %v1394
        %1428 = vrot.lane.b32.xlu0 %v1396, 48
        %v1429 = vpop.permute.xlu0 %1428
        %1430 = vrot.lane.b32.xlu0 %v1397, 48
        %v1431 = vpop.permute.xlu0 %1430
        %1432 = vrot.lane.b32.xlu0 %v1398, 48
        %v1433 = vpop.permute.xlu0 %1432
        %1434 = vrot.lane.b32.xlu0 %v1399, 48
        %v1435 = vpop.permute.xlu0 %1434
        %1436 = vrot.lane.b32.xlu0 %v1400, 48
        %v1437 = vpop.permute.xlu0 %1436
        %1438 = vrot.lane.b32.xlu0 %v1401, 48
        %v1439 = vpop.permute.xlu0 %1438
        %1440 = vrot.lane.b32.xlu0 %v1402, 48
        %v1441 = vpop.permute.xlu0 %1440
        %1442 = vrot.lane.b32.xlu0 %v1403, 48
        %v1443 = vpop.permute.xlu0 %1442
        %1444 = vrot.lane.b32.xlu0 %v1404, 48
        %v1445 = vpop.permute.xlu0 %1444
        %1446 = vrot.lane.b32.xlu0 %v1405, 48
        %v1447 = vpop.permute.xlu0 %1446
        %1448 = vrot.lane.b32.xlu0 %v1406, 48
        %v1449 = vpop.permute.xlu0 %1448
        %1450 = vrot.lane.b32.xlu0 %v1407, 48
        %v1451 = vpop.permute.xlu0 %1450
        %1452 = vrot.lane.b32.xlu0 %v1408, 48
        %v1453 = vpop.permute.xlu0 %1452
        %1454 = vrot.lane.b32.xlu0 %v1409, 48
        %v1455 = vpop.permute.xlu0 %1454
        %1456 = vrot.lane.b32.xlu0 %v1410, 48
        %v1457 = vpop.permute.xlu0 %1456
        %1458 = vrot.lane.b32.xlu0 %v1411, 48
        %v1459 = vpop.permute.xlu0 %1458
        %vm1476 = vcmask 458112
        %1477 = vst.msk [vmem:[#allocation3] sm:$0xff] %vm1476, %v1429
        %1478 = vst.msk [vmem:[#allocation3 + $0x8] sm:$0xff] %vm1476, %v1431
        %1479 = vst.msk [vmem:[#allocation3 + $0x10] sm:$0xff] %vm1476, %v1433
        %1480 = vst.msk [vmem:[#allocation3 + $0x18] sm:$0xff] %vm1476, %v1435
        %1481 = vst.msk [vmem:[#allocation3 + $0x20] sm:$0xff] %vm1476, %v1437
        %1482 = vst.msk [vmem:[#allocation3 + $0x28] sm:$0xff] %vm1476, %v1439
        %1483 = vst.msk [vmem:[#allocation3 + $0x30] sm:$0xff] %vm1476, %v1441
        %1484 = vst.msk [vmem:[#allocation3 + $0x38] sm:$0xff] %vm1476, %v1443
        %1485 = vst.msk [vmem:[#allocation3 + $0x40] sm:$0xff] %vm1476, %v1445
        %1486 = vst.msk [vmem:[#allocation3 + $0x48] sm:$0xff] %vm1476, %v1447
        %1487 = vst.msk [vmem:[#allocation3 + $0x50] sm:$0xff] %vm1476, %v1449
        %1488 = vst.msk [vmem:[#allocation3 + $0x58] sm:$0xff] %vm1476, %v1451
        %1489 = vst.msk [vmem:[#allocation3 + $0x60] sm:$0xff] %vm1476, %v1453
        %1490 = vst.msk [vmem:[#allocation3 + $0x68] sm:$0xff] %vm1476, %v1455
        %1491 = vst.msk [vmem:[#allocation3 + $0x70] sm:$0xff] %vm1476, %v1457
        %1492 = vst.msk [vmem:[#allocation3 + $0x78] sm:$0xff] %vm1476, %v1459
        %v1493 = vld [vmem:[%s1363 + $0x1] sm:$0xff]
        %v1494 = vld [vmem:[%s1363 + $0x9] sm:$0xff]
        %v1495 = vld [vmem:[%s1363 + $0x19] sm:$0xff]
        %v1496 = vld [vmem:[%s1363 + $0x21] sm:$0xff]
        %v1497 = vld [vmem:[%s1363 + $0x31] sm:$0xff]
        %v1498 = vld [vmem:[%s1363 + $0x39] sm:$0xff]
        %v1499 = vld [vmem:[%s1363 + $0x49] sm:$0xff]
        %v1500 = vld [vmem:[%s1363 + $0x51] sm:$0xff]
        %v1501 = vld [vmem:[%s1363 + $0x61] sm:$0xff]
        %v1502 = vld [vmem:[%s1363 + $0x69] sm:$0xff]
        %v1503 = vld [vmem:[%s1363 + $0x79] sm:$0xff]
        %v1504 = vld [vmem:[%s1363 + $0x81] sm:$0xff]
        %v1505 = vld [vmem:[%s1363 + $0x91] sm:$0xff]
        %v1506 = vld [vmem:[%s1363 + $0x99] sm:$0xff]
        %v1507 = vld [vmem:[%s1363 + $0xa9] sm:$0xff]
        %v1508 = vld [vmem:[%s1363 + $0xb1] sm:$0xff]
        %v1509 = vld [vmem:[%s1363 + $0xc1] sm:$0xff]
        %v1510 = vld [vmem:[%s1363 + $0xc9] sm:$0xff]
        %v1511 = vld [vmem:[%s1363 + $0xd9] sm:$0xff]
        %v1512 = vld [vmem:[%s1363 + $0xe1] sm:$0xff]
        %v1513 = vld [vmem:[%s1363 + $0xf1] sm:$0xff]
        %v1514 = vld [vmem:[%s1363 + $0xf9] sm:$0xff]
        %v1515 = vld [vmem:[%s1363 + $0x109] sm:$0xff]
        %v1516 = vld [vmem:[%s1363 + $0x111] sm:$0xff]
        %v1517 = vld [vmem:[%s1363 + $0x121] sm:$0xff]
        %v1518 = vld [vmem:[%s1363 + $0x129] sm:$0xff]
        %v1519 = vld [vmem:[%s1363 + $0x139] sm:$0xff]
        %v1520 = vld [vmem:[%s1363 + $0x141] sm:$0xff]
        %v1521 = vld [vmem:[%s1363 + $0x151] sm:$0xff]
        %v1522 = vld [vmem:[%s1363 + $0x159] sm:$0xff]
        %v1523 = vld [vmem:[%s1363 + $0x169] sm:$0xff]
        %v1524 = vld [vmem:[%s1363 + $0x171] sm:$0xff]
        %v1525 = vpack.c.bf16 %v1494, %v1493
        %v1526 = vpack.c.bf16 %v1496, %v1495
        %v1527 = vpack.c.bf16 %v1498, %v1497
        %v1528 = vpack.c.bf16 %v1500, %v1499
        %v1529 = vpack.c.bf16 %v1502, %v1501
        %v1530 = vpack.c.bf16 %v1504, %v1503
        %v1531 = vpack.c.bf16 %v1506, %v1505
        %v1532 = vpack.c.bf16 %v1508, %v1507
        %v1533 = vpack.c.bf16 %v1510, %v1509
        %v1534 = vpack.c.bf16 %v1512, %v1511
        %v1535 = vpack.c.bf16 %v1514, %v1513
        %v1536 = vpack.c.bf16 %v1516, %v1515
        %v1537 = vpack.c.bf16 %v1518, %v1517
        %v1538 = vpack.c.bf16 %v1520, %v1519
        %v1539 = vpack.c.bf16 %v1522, %v1521
        %v1540 = vpack.c.bf16 %v1524, %v1523
        %1557 = vrot.lane.b32.xlu0 %v1525, 56
        %v1558 = vpop.permute.xlu0 %1557
        %1559 = vrot.lane.b32.xlu0 %v1526, 56
        %v1560 = vpop.permute.xlu0 %1559
        %1561 = vrot.lane.b32.xlu0 %v1527, 56
        %v1562 = vpop.permute.xlu0 %1561
        %1563 = vrot.lane.b32.xlu0 %v1528, 56
        %v1564 = vpop.permute.xlu0 %1563
        %1565 = vrot.lane.b32.xlu0 %v1529, 56
        %v1566 = vpop.permute.xlu0 %1565
        %1567 = vrot.lane.b32.xlu0 %v1530, 56
        %v1568 = vpop.permute.xlu0 %1567
        %1569 = vrot.lane.b32.xlu0 %v1531, 56
        %v1570 = vpop.permute.xlu0 %1569
        %1571 = vrot.lane.b32.xlu0 %v1532, 56
        %v1572 = vpop.permute.xlu0 %1571
        %1573 = vrot.lane.b32.xlu0 %v1533, 56
        %v1574 = vpop.permute.xlu0 %1573
        %1575 = vrot.lane.b32.xlu0 %v1534, 56
        %v1576 = vpop.permute.xlu0 %1575
        %1577 = vrot.lane.b32.xlu0 %v1535, 56
        %v1578 = vpop.permute.xlu0 %1577
        %1579 = vrot.lane.b32.xlu0 %v1536, 56
        %v1580 = vpop.permute.xlu0 %1579
        %1581 = vrot.lane.b32.xlu0 %v1537, 56
        %v1582 = vpop.permute.xlu0 %1581
        %1583 = vrot.lane.b32.xlu0 %v1538, 56
        %v1584 = vpop.permute.xlu0 %1583
        %1585 = vrot.lane.b32.xlu0 %v1539, 56
        %v1586 = vpop.permute.xlu0 %1585
        %1587 = vrot.lane.b32.xlu0 %v1540, 56
        %v1588 = vpop.permute.xlu0 %1587
        %vm1605 = vcmask 523712
        %1606 = vst.msk [vmem:[#allocation3] sm:$0xff] %vm1605, %v1558
        %1607 = vst.msk [vmem:[#allocation3 + $0x8] sm:$0xff] %vm1605, %v1560
        %1608 = vst.msk [vmem:[#allocation3 + $0x10] sm:$0xff] %vm1605, %v1562
        %1609 = vst.msk [vmem:[#allocation3 + $0x18] sm:$0xff] %vm1605, %v1564
        %1610 = vst.msk [vmem:[#allocation3 + $0x20] sm:$0xff] %vm1605, %v1566
        %1611 = vst.msk [vmem:[#allocation3 + $0x28] sm:$0xff] %vm1605, %v1568
        %1612 = vst.msk [vmem:[#allocation3 + $0x30] sm:$0xff] %vm1605, %v1570
        %1613 = vst.msk [vmem:[#allocation3 + $0x38] sm:$0xff] %vm1605, %v1572
        %1614 = vst.msk [vmem:[#allocation3 + $0x40] sm:$0xff] %vm1605, %v1574
        %1615 = vst.msk [vmem:[#allocation3 + $0x48] sm:$0xff] %vm1605, %v1576
        %1616 = vst.msk [vmem:[#allocation3 + $0x50] sm:$0xff] %vm1605, %v1578
        %1617 = vst.msk [vmem:[#allocation3 + $0x58] sm:$0xff] %vm1605, %v1580
        %1618 = vst.msk [vmem:[#allocation3 + $0x60] sm:$0xff] %vm1605, %v1582
        %1619 = vst.msk [vmem:[#allocation3 + $0x68] sm:$0xff] %vm1605, %v1584
        %1620 = vst.msk [vmem:[#allocation3 + $0x70] sm:$0xff] %vm1605, %v1586
        %1621 = vst.msk [vmem:[#allocation3 + $0x78] sm:$0xff] %vm1605, %v1588
        %v1622 = vld [vmem:[%s1363 + $0x2] sm:$0xff]
        %v1623 = vld [vmem:[%s1363 + $0xa] sm:$0xff]
        %v1624 = vld [vmem:[%s1363 + $0x1a] sm:$0xff]
        %v1625 = vld [vmem:[%s1363 + $0x22] sm:$0xff]
        %v1626 = vld [vmem:[%s1363 + $0x32] sm:$0xff]
        %v1627 = vld [vmem:[%s1363 + $0x3a] sm:$0xff]
        %v1628 = vld [vmem:[%s1363 + $0x4a] sm:$0xff]
        %v1629 = vld [vmem:[%s1363 + $0x52] sm:$0xff]
        %v1630 = vld [vmem:[%s1363 + $0x62] sm:$0xff]
        %v1631 = vld [vmem:[%s1363 + $0x6a] sm:$0xff]
        %v1632 = vld [vmem:[%s1363 + $0x7a] sm:$0xff]
        %v1633 = vld [vmem:[%s1363 + $0x82] sm:$0xff]
        %v1634 = vld [vmem:[%s1363 + $0x92] sm:$0xff]
        %v1635 = vld [vmem:[%s1363 + $0x9a] sm:$0xff]
        %v1636 = vld [vmem:[%s1363 + $0xaa] sm:$0xff]
        %v1637 = vld [vmem:[%s1363 + $0xb2] sm:$0xff]
        %v1638 = vld [vmem:[%s1363 + $0xc2] sm:$0xff]
        %v1639 = vld [vmem:[%s1363 + $0xca] sm:$0xff]
        %v1640 = vld [vmem:[%s1363 + $0xda] sm:$0xff]
        %v1641 = vld [vmem:[%s1363 + $0xe2] sm:$0xff]
        %v1642 = vld [vmem:[%s1363 + $0xf2] sm:$0xff]
        %v1643 = vld [vmem:[%s1363 + $0xfa] sm:$0xff]
        %v1644 = vld [vmem:[%s1363 + $0x10a] sm:$0xff]
        %v1645 = vld [vmem:[%s1363 + $0x112] sm:$0xff]
        %v1646 = vld [vmem:[%s1363 + $0x122] sm:$0xff]
        %v1647 = vld [vmem:[%s1363 + $0x12a] sm:$0xff]
        %v1648 = vld [vmem:[%s1363 + $0x13a] sm:$0xff]
        %v1649 = vld [vmem:[%s1363 + $0x142] sm:$0xff]
        %v1650 = vld [vmem:[%s1363 + $0x152] sm:$0xff]
        %v1651 = vld [vmem:[%s1363 + $0x15a] sm:$0xff]
        %v1652 = vld [vmem:[%s1363 + $0x16a] sm:$0xff]
        %v1653 = vld [vmem:[%s1363 + $0x172] sm:$0xff]
        %v1654 = vpack.c.bf16 %v1623, %v1622
        %v1655 = vpack.c.bf16 %v1625, %v1624
        %v1656 = vpack.c.bf16 %v1627, %v1626
        %v1657 = vpack.c.bf16 %v1629, %v1628
        %v1658 = vpack.c.bf16 %v1631, %v1630
        %v1659 = vpack.c.bf16 %v1633, %v1632
        %v1660 = vpack.c.bf16 %v1635, %v1634
        %v1661 = vpack.c.bf16 %v1637, %v1636
        %v1662 = vpack.c.bf16 %v1639, %v1638
        %v1663 = vpack.c.bf16 %v1641, %v1640
        %v1664 = vpack.c.bf16 %v1643, %v1642
        %v1665 = vpack.c.bf16 %v1645, %v1644
        %v1666 = vpack.c.bf16 %v1647, %v1646
        %v1667 = vpack.c.bf16 %v1649, %v1648
        %v1668 = vpack.c.bf16 %v1651, %v1650
        %v1669 = vpack.c.bf16 %v1653, %v1652
        %1686 = vrot.lane.b32.xlu0 %v1654, 64
        %v1687 = vpop.permute.xlu0 %1686
        %1688 = vrot.lane.b32.xlu0 %v1655, 64
        %v1689 = vpop.permute.xlu0 %1688
        %1690 = vrot.lane.b32.xlu0 %v1656, 64
        %v1691 = vpop.permute.xlu0 %1690
        %1692 = vrot.lane.b32.xlu0 %v1657, 64
        %v1693 = vpop.permute.xlu0 %1692
        %1694 = vrot.lane.b32.xlu0 %v1658, 64
        %v1695 = vpop.permute.xlu0 %1694
        %1696 = vrot.lane.b32.xlu0 %v1659, 64
        %v1697 = vpop.permute.xlu0 %1696
        %1698 = vrot.lane.b32.xlu0 %v1660, 64
        %v1699 = vpop.permute.xlu0 %1698
        %1700 = vrot.lane.b32.xlu0 %v1661, 64
        %v1701 = vpop.permute.xlu0 %1700
        %1702 = vrot.lane.b32.xlu0 %v1662, 64
        %v1703 = vpop.permute.xlu0 %1702
        %1704 = vrot.lane.b32.xlu0 %v1663, 64
        %v1705 = vpop.permute.xlu0 %1704
        %1706 = vrot.lane.b32.xlu0 %v1664, 64
        %v1707 = vpop.permute.xlu0 %1706
        %1708 = vrot.lane.b32.xlu0 %v1665, 64
        %v1709 = vpop.permute.xlu0 %1708
        %1710 = vrot.lane.b32.xlu0 %v1666, 64
        %v1711 = vpop.permute.xlu0 %1710
        %1712 = vrot.lane.b32.xlu0 %v1667, 64
        %v1713 = vpop.permute.xlu0 %1712
        %1714 = vrot.lane.b32.xlu0 %v1668, 64
        %v1715 = vpop.permute.xlu0 %1714
        %1716 = vrot.lane.b32.xlu0 %v1669, 64
        %v1717 = vpop.permute.xlu0 %1716
        %vm1734 = vcmask 589312
        %1735 = vst.msk [vmem:[#allocation3] sm:$0xff] %vm1734, %v1687
        %1736 = vst.msk [vmem:[#allocation3 + $0x8] sm:$0xff] %vm1734, %v1689
        %1737 = vst.msk [vmem:[#allocation3 + $0x10] sm:$0xff] %vm1734, %v1691
        %1738 = vst.msk [vmem:[#allocation3 + $0x18] sm:$0xff] %vm1734, %v1693
        %1739 = vst.msk [vmem:[#allocation3 + $0x20] sm:$0xff] %vm1734, %v1695
        %1740 = vst.msk [vmem:[#allocation3 + $0x28] sm:$0xff] %vm1734, %v1697
        %1741 = vst.msk [vmem:[#allocation3 + $0x30] sm:$0xff] %vm1734, %v1699
        %1742 = vst.msk [vmem:[#allocation3 + $0x38] sm:$0xff] %vm1734, %v1701
        %1743 = vst.msk [vmem:[#allocation3 + $0x40] sm:$0xff] %vm1734, %v1703
        %1744 = vst.msk [vmem:[#allocation3 + $0x48] sm:$0xff] %vm1734, %v1705
        %1745 = vst.msk [vmem:[#allocation3 + $0x50] sm:$0xff] %vm1734, %v1707
        %1746 = vst.msk [vmem:[#allocation3 + $0x58] sm:$0xff] %vm1734, %v1709
        %1747 = vst.msk [vmem:[#allocation3 + $0x60] sm:$0xff] %vm1734, %v1711
        %1748 = vst.msk [vmem:[#allocation3 + $0x68] sm:$0xff] %vm1734, %v1713
        %1749 = vst.msk [vmem:[#allocation3 + $0x70] sm:$0xff] %vm1734, %v1715
        %1750 = vst.msk [vmem:[#allocation3 + $0x78] sm:$0xff] %vm1734, %v1717
        %v1751 = vld [vmem:[#allocation3] sm:$0xff]
        %v1752 = vld [vmem:[#allocation3 + $0x8] sm:$0xff]
        %v1753 = vld [vmem:[#allocation3 + $0x10] sm:$0xff]
        %v1754 = vld [vmem:[#allocation3 + $0x18] sm:$0xff]
        %v1755 = vld [vmem:[#allocation3 + $0x20] sm:$0xff]
        %v1756 = vld [vmem:[#allocation3 + $0x28] sm:$0xff]
        %v1757 = vld [vmem:[#allocation3 + $0x30] sm:$0xff]
        %v1758 = vld [vmem:[#allocation3 + $0x38] sm:$0xff]
        %v1759 = vld [vmem:[#allocation3 + $0x40] sm:$0xff]
        %v1760 = vld [vmem:[#allocation3 + $0x48] sm:$0xff]
        %v1761 = vld [vmem:[#allocation3 + $0x50] sm:$0xff]
        %v1762 = vld [vmem:[#allocation3 + $0x58] sm:$0xff]
        %v1763 = vld [vmem:[#allocation3 + $0x60] sm:$0xff]
        %v1764 = vld [vmem:[#allocation3 + $0x68] sm:$0xff]
        %v1765 = vld [vmem:[#allocation3 + $0x70] sm:$0xff]
        %v1766 = vld [vmem:[#allocation3 + $0x78] sm:$0xff]
        %v1767 = vld [vmem:[%s3] sm:$0xf]
        %v1768 = vld [vmem:[%s3 + $0x4] sm:$0xf]
        %v1769 = vld [vmem:[%s3 + $0x8] sm:$0xf]
        %v1770 = vld [vmem:[%s3 + $0xc] sm:$0xf]
        %v1771 = vld [vmem:[%s3 + $0x10] sm:$0xf]
        %v1772 = vld [vmem:[%s3 + $0x14] sm:$0xf]
        %v1773 = vld [vmem:[%s3 + $0x18] sm:$0xf]
        %v1774 = vld [vmem:[%s3 + $0x1c] sm:$0xf]
        %v1775 = vld [vmem:[%s3 + $0x20] sm:$0xf]
        %v1776 = vld [vmem:[%s4] sm:$0x1]
        %v1778 = vlaneseq
        %v1779 = vshrl.u32 %v1778, 7
        %v1780 = vsub.s32 0, %v1779
        %v1781 = vrot.slane %v1776, %v1780
        %v1792 = vunpack.c.l.b16 %v1767
        %v1793 = vunpack.c.l.b16 %v1768
        %v1794 = vunpack.c.l.b16 %v1769
        %v1795 = vunpack.c.l.b16 %v1770
        %v1796 = vunpack.c.l.b16 %v1771
        %v1797 = vunpack.c.l.b16 %v1772
        %v1798 = vunpack.c.l.b16 %v1773
        %v1799 = vunpack.c.l.b16 %v1774
        %v1800 = vunpack.c.l.b16 %v1775
        %v1801 = vpack.c.b16 %v1793, %v1792
        %v1802 = vpack.c.b16 %v1795, %v1794
        %v1803 = vpack.c.b16 %v1797, %v1796
        %v1804 = vpack.c.b16 %v1799, %v1798
        %v1805 = vpack.c.b16 %v1800, %v1800
        %vm1810 = vcmask 588800
        %v1812 = vsel %vm1810, %v1751, 0
        %v1815 = vsel %vm1810, %v1752, 0
        %v1818 = vsel %vm1810, %v1753, 0
        %v1821 = vsel %vm1810, %v1754, 0
        %v1824 = vsel %vm1810, %v1755, 0
        %v1827 = vsel %vm1810, %v1756, 0
        %v1830 = vsel %vm1810, %v1757, 0
        %v1833 = vsel %vm1810, %v1758, 0
        %v1836 = vsel %vm1810, %v1759, 0
        %v1839 = vsel %vm1810, %v1760, 0
        %v1842 = vsel %vm1810, %v1761, 0
        %v1845 = vsel %vm1810, %v1762, 0
        %v1848 = vsel %vm1810, %v1763, 0
        %v1851 = vsel %vm1810, %v1764, 0
        %v1854 = vsel %vm1810, %v1765, 0
        %v1857 = vsel %vm1810, %v1766, 0
        %vm1859 = vcmask 1043456
        %v1861 = vsel %vm1859, %v1805, 0
        %1863 = vmatprep.subr.bf16.mxu0 0
        %1864 = vmatpush1.bf16.msra.mxu0 %v1801
        %1865 = vmatprep.subr.bf16.mxu0 0
        %1866 = vmatpush1.bf16.msra.mxu0 %v1802
        %1867 = vmatprep.subr.bf16.mxu0 0
        %1868 = vmatpush1.bf16.msra.mxu0 %v1803
        %1869 = vmatprep.subr.bf16.mxu0 0
        %1870 = vmatpush1.bf16.msra.mxu0 %v1804
        %1871 = vmatprep.subr.bf16.mxu0 0
        %1872 = vmatpush1.bf16.msra.mxu0 %v1861
        %1873 = vmatprep.subr.bf16.mxu0 0
        %1874 = vmatpush1.bf16.msra.mxu0 0
        %1875 = vmatprep.subr.bf16.mxu0 0
        %1876 = vmatpush1.bf16.msra.mxu0 0
        %1877 = vmatprep.subr.bf16.mxu0 0
        %1878 = vmatpush1.bf16.msra.mxu0 0
        %1879 = vmatprep.subr.bf16.mxu0 0
        %1880 = vmatpush1.bf16.msra.mxu0 0
        %1881 = vmatprep.subr.bf16.mxu0 0
        %1882 = vmatpush1.bf16.msra.mxu0 0
        %1883 = vmatprep.subr.bf16.mxu0 0
        %1884 = vmatpush1.bf16.msra.mxu0 0
        %1885 = vmatprep.subr.bf16.mxu0 0
        %1886 = vmatpush1.bf16.msra.mxu0 0
        %1887 = vmatprep.subr.bf16.mxu0 0
        %1888 = vmatpush1.bf16.msra.mxu0 0
        %1889 = vmatprep.subr.bf16.mxu0 0
        %1890 = vmatpush1.bf16.msra.mxu0 0
        %1891 = vmatprep.subr.bf16.mxu0 0
        %1892 = vmatpush1.bf16.msra.mxu0 0
        %1893 = vmatprep.subr.bf16.mxu0 0
        %1894 = vmatpush1.bf16.msra.mxu0 0
        %1895 = vmatprep.mubr.bf16.mxu0 0
        %1896 = vmatmul.mubr.bf16.gmra.mrb[0].mxu0 %v1812
        %v1897 = vpop.f32.mrb[0].mxu0
        %v1898 = vadd.f32 %v1781, %v1897
        %v1899 = vpop.f32.mrb[0].mxu0
        %v1900 = vpop.f32.mrb[0].mxu0
        %v1901 = vadd.f32 %v1781, %v1900
        %v1902 = vpop.f32.mrb[0].mxu0
        %1903 = vmatprep.mubr.bf16.mxu0 0
        %1904 = vmatmul.mubr.bf16.gmra.mrb[0].mxu0 %v1815
        %v1905 = vpop.f32.mrb[0].mxu0
        %v1906 = vadd.f32 %v1781, %v1905
        %v1907 = vpop.f32.mrb[0].mxu0
        %v1908 = vpop.f32.mrb[0].mxu0
        %v1909 = vadd.f32 %v1781, %v1908
        %v1910 = vpop.f32.mrb[0].mxu0
        %1911 = vmatprep.mubr.bf16.mxu0 0
        %1912 = vmatmul.mubr.bf16.gmra.mrb[0].mxu0 %v1818
        %v1913 = vpop.f32.mrb[0].mxu0
        %v1914 = vadd.f32 %v1781, %v1913
        %v1915 = vpop.f32.mrb[0].mxu0
        %v1916 = vpop.f32.mrb[0].mxu0
        %v1917 = vadd.f32 %v1781, %v1916
        %v1918 = vpop.f32.mrb[0].mxu0
        %1919 = vmatprep.mubr.bf16.mxu0 0
        %1920 = vmatmul.mubr.bf16.gmra.mrb[0].mxu0 %v1821
        %v1921 = vpop.f32.mrb[0].mxu0
        %v1922 = vadd.f32 %v1781, %v1921
        %v1923 = vpop.f32.mrb[0].mxu0
        %v1924 = vpop.f32.mrb[0].mxu0
        %v1925 = vadd.f32 %v1781, %v1924
        %v1926 = vpop.f32.mrb[0].mxu0
        %1927 = vmatprep.mubr.bf16.mxu0 0
        %1928 = vmatmul.mubr.bf16.gmra.mrb[0].mxu0 %v1824
        %v1929 = vpop.f32.mrb[0].mxu0
        %v1930 = vadd.f32 %v1781, %v1929
        %v1931 = vpop.f32.mrb[0].mxu0
        %v1932 = vpop.f32.mrb[0].mxu0
        %v1933 = vadd.f32 %v1781, %v1932
        %v1934 = vpop.f32.mrb[0].mxu0
        %1935 = vmatprep.mubr.bf16.mxu0 0
        %1936 = vmatmul.mubr.bf16.gmra.mrb[0].mxu0 %v1827
        %v1937 = vpop.f32.mrb[0].mxu0
        %v1938 = vadd.f32 %v1781, %v1937
        %v1939 = vpop.f32.mrb[0].mxu0
        %v1940 = vpop.f32.mrb[0].mxu0
        %v1941 = vadd.f32 %v1781, %v1940
        %v1942 = vpop.f32.mrb[0].mxu0
        %1943 = vmatprep.mubr.bf16.mxu0 0
        %1944 = vmatmul.mubr.bf16.gmra.mrb[0].mxu0 %v1830
        %v1945 = vpop.f32.mrb[0].mxu0
        %v1946 = vadd.f32 %v1781, %v1945
        %v1947 = vpop.f32.mrb[0].mxu0
        %v1948 = vpop.f32.mrb[0].mxu0
        %v1949 = vadd.f32 %v1781, %v1948
        %v1950 = vpop.f32.mrb[0].mxu0
        %1951 = vmatprep.mubr.bf16.mxu0 0
        %1952 = vmatmul.mubr.bf16.gmra.mrb[0].mxu0 %v1833
        %v1953 = vpop.f32.mrb[0].mxu0
        %v1954 = vadd.f32 %v1781, %v1953
        %v1955 = vpop.f32.mrb[0].mxu0
        %v1956 = vpop.f32.mrb[0].mxu0
        %v1957 = vadd.f32 %v1781, %v1956
        %v1958 = vpop.f32.mrb[0].mxu0
        %1959 = vmatprep.mubr.bf16.mxu0 0
        %1960 = vmatmul.mubr.bf16.gmra.mrb[0].mxu0 %v1836
        %v1961 = vpop.f32.mrb[0].mxu0
        %v1962 = vadd.f32 %v1781, %v1961
        %v1963 = vpop.f32.mrb[0].mxu0
        %v1964 = vpop.f32.mrb[0].mxu0
        %v1965 = vadd.f32 %v1781, %v1964
        %v1966 = vpop.f32.mrb[0].mxu0
        %1967 = vmatprep.mubr.bf16.mxu0 0
        %1968 = vmatmul.mubr.bf16.gmra.mrb[0].mxu0 %v1839
        %v1969 = vpop.f32.mrb[0].mxu0
        %v1970 = vadd.f32 %v1781, %v1969
        %v1971 = vpop.f32.mrb[0].mxu0
        %v1972 = vpop.f32.mrb[0].mxu0
        %v1973 = vadd.f32 %v1781, %v1972
        %v1974 = vpop.f32.mrb[0].mxu0
        %1975 = vmatprep.mubr.bf16.mxu0 0
        %1976 = vmatmul.mubr.bf16.gmra.mrb[0].mxu0 %v1842
        %v1977 = vpop.f32.mrb[0].mxu0
        %v1978 = vadd.f32 %v1781, %v1977
        %v1979 = vpop.f32.mrb[0].mxu0
        %v1980 = vpop.f32.mrb[0].mxu0
        %v1981 = vadd.f32 %v1781, %v1980
        %v1982 = vpop.f32.mrb[0].mxu0
        %1983 = vmatprep.mubr.bf16.mxu0 0
        %1984 = vmatmul.mubr.bf16.gmra.mrb[0].mxu0 %v1845
        %v1985 = vpop.f32.mrb[0].mxu0
        %v1986 = vadd.f32 %v1781, %v1985
        %v1987 = vpop.f32.mrb[0].mxu0
        %v1988 = vpop.f32.mrb[0].mxu0
        %v1989 = vadd.f32 %v1781, %v1988
        %v1990 = vpop.f32.mrb[0].mxu0
        %1991 = vmatprep.mubr.bf16.mxu0 0
        %1992 = vmatmul.mubr.bf16.gmra.mrb[0].mxu0 %v1848
        %v1993 = vpop.f32.mrb[0].mxu0
        %v1994 = vadd.f32 %v1781, %v1993
        %v1995 = vpop.f32.mrb[0].mxu0
        %v1996 = vpop.f32.mrb[0].mxu0
        %v1997 = vadd.f32 %v1781, %v1996
        %v1998 = vpop.f32.mrb[0].mxu0
        %1999 = vmatprep.mubr.bf16.mxu0 0
        %2000 = vmatmul.mubr.bf16.gmra.mrb[0].mxu0 %v1851
        %v2001 = vpop.f32.mrb[0].mxu0
        %v2002 = vadd.f32 %v1781, %v2001
        %v2003 = vpop.f32.mrb[0].mxu0
        %v2004 = vpop.f32.mrb[0].mxu0
        %v2005 = vadd.f32 %v1781, %v2004
        %v2006 = vpop.f32.mrb[0].mxu0
        %2007 = vmatprep.mubr.bf16.mxu0 0
        %2008 = vmatmul.mubr.bf16.gmra.mrb[0].mxu0 %v1854
        %v2009 = vpop.f32.mrb[0].mxu0
        %v2010 = vadd.f32 %v1781, %v2009
        %v2011 = vpop.f32.mrb[0].mxu0
        %v2012 = vpop.f32.mrb[0].mxu0
        %v2013 = vadd.f32 %v1781, %v2012
        %v2014 = vpop.f32.mrb[0].mxu0
        %2015 = vmatprep.mubr.bf16.mxu0 0
        %2016 = vmatmul.mubr.bf16.gmra.mrb[0].mxu0 %v1857
        %v2017 = vpop.f32.mrb[0].mxu0
        %v2018 = vadd.f32 %v1781, %v2017
        %v2019 = vpop.f32.mrb[0].mxu0
        %v2020 = vpop.f32.mrb[0].mxu0
        %v2021 = vadd.f32 %v1781, %v2020
        %v2022 = vpop.f32.mrb[0].mxu0
        %2023 = vdwg.mxu0
        %v2024 = vmax.f32 %v1898, 0.0
        %v2025 = vmax.f32 %v1901, 0.0
        %v2026 = vmax.f32 %v1906, 0.0
        %v2027 = vmax.f32 %v1909, 0.0
        %v2028 = vmax.f32 %v1914, 0.0
        %v2029 = vmax.f32 %v1917, 0.0
        %v2030 = vmax.f32 %v1922, 0.0
        %v2031 = vmax.f32 %v1925, 0.0
        %v2032 = vmax.f32 %v1930, 0.0
        %v2033 = vmax.f32 %v1933, 0.0
        %v2034 = vmax.f32 %v1938, 0.0
        %v2035 = vmax.f32 %v1941, 0.0
        %v2036 = vmax.f32 %v1946, 0.0
        %v2037 = vmax.f32 %v1949, 0.0
        %v2038 = vmax.f32 %v1954, 0.0
        %v2039 = vmax.f32 %v1957, 0.0
        %v2040 = vmax.f32 %v1962, 0.0
        %v2041 = vmax.f32 %v1965, 0.0
        %v2042 = vmax.f32 %v1970, 0.0
        %v2043 = vmax.f32 %v1973, 0.0
        %v2044 = vmax.f32 %v1978, 0.0
        %v2045 = vmax.f32 %v1981, 0.0
        %v2046 = vmax.f32 %v1986, 0.0
        %v2047 = vmax.f32 %v1989, 0.0
        %v2048 = vmax.f32 %v1994, 0.0
        %v2049 = vmax.f32 %v1997, 0.0
        %v2050 = vmax.f32 %v2002, 0.0
        %v2051 = vmax.f32 %v2005, 0.0
        %v2052 = vmax.f32 %v2010, 0.0
        %v2053 = vmax.f32 %v2013, 0.0
        %v2054 = vmax.f32 %v2018, 0.0
        %v2055 = vmax.f32 %v2021, 0.0
        %v2056 = vpack.c.bf16 %v2025, %v2024
        %v2057 = vpack.c.bf16 %v2027, %v2026
        %v2058 = vpack.c.bf16 %v2029, %v2028
        %v2059 = vpack.c.bf16 %v2031, %v2030
        %v2060 = vpack.c.bf16 %v2033, %v2032
        %v2061 = vpack.c.bf16 %v2035, %v2034
        %v2062 = vpack.c.bf16 %v2037, %v2036
        %v2063 = vpack.c.bf16 %v2039, %v2038
        %v2064 = vpack.c.bf16 %v2041, %v2040
        %v2065 = vpack.c.bf16 %v2043, %v2042
        %v2066 = vpack.c.bf16 %v2045, %v2044
        %v2067 = vpack.c.bf16 %v2047, %v2046
        %v2068 = vpack.c.bf16 %v2049, %v2048
        %v2069 = vpack.c.bf16 %v2051, %v2050
        %v2070 = vpack.c.bf16 %v2053, %v2052
        %v2071 = vpack.c.bf16 %v2055, %v2054
        %v2072 = vld [vmem:[%s5] sm:$0xf]
        %v2073 = vld [vmem:[%s6] sm:$0x1]
        %v2075 = vlaneseq
        %v2076 = vshrl.u32 %v2075, 7
        %v2077 = vsub.s32 0, %v2076
        %v2078 = vrot.slane %v2073, %v2077
        %v2081 = vsel %vm627, %v2056, 0
        %v2084 = vsel %vm627, %v2057, 0
        %v2087 = vsel %vm627, %v2058, 0
        %v2090 = vsel %vm627, %v2059, 0
        %v2093 = vsel %vm627, %v2060, 0
        %v2096 = vsel %vm627, %v2061, 0
        %v2099 = vsel %vm627, %v2062, 0
        %v2102 = vsel %vm627, %v2063, 0
        %v2105 = vsel %vm627, %v2064, 0
        %v2108 = vsel %vm627, %v2065, 0
        %v2111 = vsel %vm627, %v2066, 0
        %v2114 = vsel %vm627, %v2067, 0
        %v2117 = vsel %vm627, %v2068, 0
        %v2120 = vsel %vm627, %v2069, 0
        %v2123 = vsel %vm627, %v2070, 0
        %v2126 = vsel %vm627, %v2071, 0
        %v2129 = vsel %vm1859, %v2072, 0
        %2131 = vmatprep.subr.bf16.mxu0 0
        %2132 = vmatpush1.bf16.msra.mxu0 %v2129
        %2133 = vmatprep.subr.bf16.mxu0 0
        %2134 = vmatpush1.bf16.msra.mxu0 0
        %2135 = vmatprep.subr.bf16.mxu0 0
        %2136 = vmatpush1.bf16.msra.mxu0 0
        %2137 = vmatprep.subr.bf16.mxu0 0
        %2138 = vmatpush1.bf16.msra.mxu0 0
        %2139 = vmatprep.subr.bf16.mxu0 0
        %2140 = vmatpush1.bf16.msra.mxu0 0
        %2141 = vmatprep.subr.bf16.mxu0 0
        %2142 = vmatpush1.bf16.msra.mxu0 0
        %2143 = vmatprep.subr.bf16.mxu0 0
        %2144 = vmatpush1.bf16.msra.mxu0 0
        %2145 = vmatprep.subr.bf16.mxu0 0
        %2146 = vmatpush1.bf16.msra.mxu0 0
        %2147 = vmatprep.subr.bf16.mxu0 0
        %2148 = vmatpush1.bf16.msra.mxu0 0
        %2149 = vmatprep.subr.bf16.mxu0 0
        %2150 = vmatpush1.bf16.msra.mxu0 0
        %2151 = vmatprep.subr.bf16.mxu0 0
        %2152 = vmatpush1.bf16.msra.mxu0 0
        %2153 = vmatprep.subr.bf16.mxu0 0
        %2154 = vmatpush1.bf16.msra.mxu0 0
        %2155 = vmatprep.subr.bf16.mxu0 0
        %2156 = vmatpush1.bf16.msra.mxu0 0
        %2157 = vmatprep.subr.bf16.mxu0 0
        %2158 = vmatpush1.bf16.msra.mxu0 0
        %2159 = vmatprep.subr.bf16.mxu0 0
        %2160 = vmatpush1.bf16.msra.mxu0 0
        %2161 = vmatprep.subr.bf16.mxu0 0
        %2162 = vmatpush1.bf16.msra.mxu0 0
        %2163 = vmatprep.mubr.bf16.mxu0 0
        %2164 = vmatmul.mubr.bf16.gmra.mrb[0].mxu0 %v2081
        %v2165 = vpop.f32.mrb[0].mxu0
        %v2166 = vadd.f32 %v2078, %v2165
        %v2167 = vpop.f32.mrb[0].mxu0
        %v2168 = vpop.f32.mrb[0].mxu0
        %v2169 = vadd.f32 %v2078, %v2168
        %v2170 = vpop.f32.mrb[0].mxu0
        %2171 = vmatprep.mubr.bf16.mxu0 0
        %2172 = vmatmul.mubr.bf16.gmra.mrb[0].mxu0 %v2084
        %v2173 = vpop.f32.mrb[0].mxu0
        %v2174 = vadd.f32 %v2078, %v2173
        %v2175 = vpop.f32.mrb[0].mxu0
        %v2176 = vpop.f32.mrb[0].mxu0
        %v2177 = vadd.f32 %v2078, %v2176
        %v2178 = vpop.f32.mrb[0].mxu0
        %2179 = vmatprep.mubr.bf16.mxu0 0
        %2180 = vmatmul.mubr.bf16.gmra.mrb[0].mxu0 %v2087
        %v2181 = vpop.f32.mrb[0].mxu0
        %v2182 = vadd.f32 %v2078, %v2181
        %v2183 = vpop.f32.mrb[0].mxu0
        %v2184 = vpop.f32.mrb[0].mxu0
        %v2185 = vadd.f32 %v2078, %v2184
        %v2186 = vpop.f32.mrb[0].mxu0
        %2187 = vmatprep.mubr.bf16.mxu0 0
        %2188 = vmatmul.mubr.bf16.gmra.mrb[0].mxu0 %v2090
        %v2189 = vpop.f32.mrb[0].mxu0
        %v2190 = vadd.f32 %v2078, %v2189
        %v2191 = vpop.f32.mrb[0].mxu0
        %v2192 = vpop.f32.mrb[0].mxu0
        %v2193 = vadd.f32 %v2078, %v2192
        %v2194 = vpop.f32.mrb[0].mxu0
        %2195 = vmatprep.mubr.bf16.mxu0 0
        %2196 = vmatmul.mubr.bf16.gmra.mrb[0].mxu0 %v2093
        %v2197 = vpop.f32.mrb[0].mxu0
        %v2198 = vadd.f32 %v2078, %v2197
        %v2199 = vpop.f32.mrb[0].mxu0
        %v2200 = vpop.f32.mrb[0].mxu0
        %v2201 = vadd.f32 %v2078, %v2200
        %v2202 = vpop.f32.mrb[0].mxu0
        %2203 = vmatprep.mubr.bf16.mxu0 0
        %2204 = vmatmul.mubr.bf16.gmra.mrb[0].mxu0 %v2096
        %v2205 = vpop.f32.mrb[0].mxu0
        %v2206 = vadd.f32 %v2078, %v2205
        %v2207 = vpop.f32.mrb[0].mxu0
        %v2208 = vpop.f32.mrb[0].mxu0
        %v2209 = vadd.f32 %v2078, %v2208
        %v2210 = vpop.f32.mrb[0].mxu0
        %2211 = vmatprep.mubr.bf16.mxu0 0
        %2212 = vmatmul.mubr.bf16.gmra.mrb[0].mxu0 %v2099
        %v2213 = vpop.f32.mrb[0].mxu0
        %v2214 = vadd.f32 %v2078, %v2213
        %v2215 = vpop.f32.mrb[0].mxu0
        %v2216 = vpop.f32.mrb[0].mxu0
        %v2217 = vadd.f32 %v2078, %v2216
        %v2218 = vpop.f32.mrb[0].mxu0
        %2219 = vmatprep.mubr.bf16.mxu0 0
        %2220 = vmatmul.mubr.bf16.gmra.mrb[0].mxu0 %v2102
        %v2221 = vpop.f32.mrb[0].mxu0
        %v2222 = vadd.f32 %v2078, %v2221
        %v2223 = vpop.f32.mrb[0].mxu0
        %v2224 = vpop.f32.mrb[0].mxu0
        %v2225 = vadd.f32 %v2078, %v2224
        %v2226 = vpop.f32.mrb[0].mxu0
        %2227 = vmatprep.mubr.bf16.mxu0 0
        %2228 = vmatmul.mubr.bf16.gmra.mrb[0].mxu0 %v2105
        %v2229 = vpop.f32.mrb[0].mxu0
        %v2230 = vadd.f32 %v2078, %v2229
        %v2231 = vpop.f32.mrb[0].mxu0
        %v2232 = vpop.f32.mrb[0].mxu0
        %v2233 = vadd.f32 %v2078, %v2232
        %v2234 = vpop.f32.mrb[0].mxu0
        %2235 = vmatprep.mubr.bf16.mxu0 0
        %2236 = vmatmul.mubr.bf16.gmra.mrb[0].mxu0 %v2108
        %v2237 = vpop.f32.mrb[0].mxu0
        %v2238 = vadd.f32 %v2078, %v2237
        %v2239 = vpop.f32.mrb[0].mxu0
        %v2240 = vpop.f32.mrb[0].mxu0
        %v2241 = vadd.f32 %v2078, %v2240
        %v2242 = vpop.f32.mrb[0].mxu0
        %2243 = vmatprep.mubr.bf16.mxu0 0
        %2244 = vmatmul.mubr.bf16.gmra.mrb[0].mxu0 %v2111
        %v2245 = vpop.f32.mrb[0].mxu0
        %v2246 = vadd.f32 %v2078, %v2245
        %v2247 = vpop.f32.mrb[0].mxu0
        %v2248 = vpop.f32.mrb[0].mxu0
        %v2249 = vadd.f32 %v2078, %v2248
        %v2250 = vpop.f32.mrb[0].mxu0
        %2251 = vmatprep.mubr.bf16.mxu0 0
        %2252 = vmatmul.mubr.bf16.gmra.mrb[0].mxu0 %v2114
        %v2253 = vpop.f32.mrb[0].mxu0
        %v2254 = vadd.f32 %v2078, %v2253
        %v2255 = vpop.f32.mrb[0].mxu0
        %v2256 = vpop.f32.mrb[0].mxu0
        %v2257 = vadd.f32 %v2078, %v2256
        %v2258 = vpop.f32.mrb[0].mxu0
        %2259 = vmatprep.mubr.bf16.mxu0 0
        %2260 = vmatmul.mubr.bf16.gmra.mrb[0].mxu0 %v2117
        %v2261 = vpop.f32.mrb[0].mxu0
        %v2262 = vadd.f32 %v2078, %v2261
        %v2263 = vpop.f32.mrb[0].mxu0
        %v2264 = vpop.f32.mrb[0].mxu0
        %v2265 = vadd.f32 %v2078, %v2264
        %v2266 = vpop.f32.mrb[0].mxu0
        %2267 = vmatprep.mubr.bf16.mxu0 0
        %2268 = vmatmul.mubr.bf16.gmra.mrb[0].mxu0 %v2120
        %v2269 = vpop.f32.mrb[0].mxu0
        %v2270 = vadd.f32 %v2078, %v2269
        %v2271 = vpop.f32.mrb[0].mxu0
        %v2272 = vpop.f32.mrb[0].mxu0
        %v2273 = vadd.f32 %v2078, %v2272
        %v2274 = vpop.f32.mrb[0].mxu0
        %2275 = vmatprep.mubr.bf16.mxu0 0
        %2276 = vmatmul.mubr.bf16.gmra.mrb[0].mxu0 %v2123
        %v2277 = vpop.f32.mrb[0].mxu0
        %v2278 = vadd.f32 %v2078, %v2277
        %v2279 = vpop.f32.mrb[0].mxu0
        %v2280 = vpop.f32.mrb[0].mxu0
        %v2281 = vadd.f32 %v2078, %v2280
        %v2282 = vpop.f32.mrb[0].mxu0
        %2283 = vmatprep.mubr.bf16.mxu0 0
        %2284 = vmatmul.mubr.bf16.gmra.mrb[0].mxu0 %v2126
        %v2285 = vpop.f32.mrb[0].mxu0
        %v2286 = vadd.f32 %v2078, %v2285
        %v2287 = vpop.f32.mrb[0].mxu0
        %v2288 = vpop.f32.mrb[0].mxu0
        %v2289 = vadd.f32 %v2078, %v2288
        %v2290 = vpop.f32.mrb[0].mxu0
        %2291 = vdwg.mxu0
        %v2292 = vadd.f32 %v2166, %v298
        %v2293 = vadd.f32 %v2169, %v299
        %v2294 = vadd.f32 %v2174, %v300
        %v2295 = vadd.f32 %v2177, %v301
        %v2296 = vadd.f32 %v2182, %v302
        %v2297 = vadd.f32 %v2185, %v303
        %v2298 = vadd.f32 %v2190, %v304
        %v2299 = vadd.f32 %v2193, %v305
        %v2300 = vadd.f32 %v2198, %v306
        %v2301 = vadd.f32 %v2201, %v307
        %v2302 = vadd.f32 %v2206, %v308
        %v2303 = vadd.f32 %v2209, %v309
        %v2304 = vadd.f32 %v2214, %v310
        %v2305 = vadd.f32 %v2217, %v311
        %v2306 = vadd.f32 %v2222, %v312
        %v2307 = vadd.f32 %v2225, %v313
        %v2308 = vadd.f32 %v2230, %v314
        %v2309 = vadd.f32 %v2233, %v315
        %v2310 = vadd.f32 %v2238, %v316
        %v2311 = vadd.f32 %v2241, %v317
        %v2312 = vadd.f32 %v2246, %v318
        %v2313 = vadd.f32 %v2249, %v319
        %v2314 = vadd.f32 %v2254, %v320
        %v2315 = vadd.f32 %v2257, %v321
        %v2316 = vadd.f32 %v2262, %v322
        %v2317 = vadd.f32 %v2265, %v323
        %v2318 = vadd.f32 %v2270, %v324
        %v2319 = vadd.f32 %v2273, %v325
        %v2320 = vadd.f32 %v2278, %v326
        %v2321 = vadd.f32 %v2281, %v327
        %v2322 = vadd.f32 %v2286, %v328
        %v2323 = vadd.f32 %v2289, %v329
        %v2324 = vmax.f32 %v2292, 0.0
        %v2325 = vmax.f32 %v2293, 0.0
        %v2326 = vmax.f32 %v2294, 0.0
        %v2327 = vmax.f32 %v2295, 0.0
        %v2328 = vmax.f32 %v2296, 0.0
        %v2329 = vmax.f32 %v2297, 0.0
        %v2330 = vmax.f32 %v2298, 0.0
        %v2331 = vmax.f32 %v2299, 0.0
        %v2332 = vmax.f32 %v2300, 0.0
        %v2333 = vmax.f32 %v2301, 0.0
        %v2334 = vmax.f32 %v2302, 0.0
        %v2335 = vmax.f32 %v2303, 0.0
        %v2336 = vmax.f32 %v2304, 0.0
        %v2337 = vmax.f32 %v2305, 0.0
        %v2338 = vmax.f32 %v2306, 0.0
        %v2339 = vmax.f32 %v2307, 0.0
        %v2340 = vmax.f32 %v2308, 0.0
        %v2341 = vmax.f32 %v2309, 0.0
        %v2342 = vmax.f32 %v2310, 0.0
        %v2343 = vmax.f32 %v2311, 0.0
        %v2344 = vmax.f32 %v2312, 0.0
        %v2345 = vmax.f32 %v2313, 0.0
        %v2346 = vmax.f32 %v2314, 0.0
        %v2347 = vmax.f32 %v2315, 0.0
        %v2348 = vmax.f32 %v2316, 0.0
        %v2349 = vmax.f32 %v2317, 0.0
        %v2350 = vmax.f32 %v2318, 0.0
        %v2351 = vmax.f32 %v2319, 0.0
        %v2352 = vmax.f32 %v2320, 0.0
        %v2353 = vmax.f32 %v2321, 0.0
        %v2354 = vmax.f32 %v2322, 0.0
        %v2355 = vmax.f32 %v2323, 0.0
        %2356 = vst.msk [vmem:[%s296] sm:$0xff] %vm369, %v2324
        %2357 = vst.msk [vmem:[%s296 + $0x8] sm:$0xff] %vm369, %v2325
        %2358 = vst.msk [vmem:[%s296 + $0x10] sm:$0xff] %vm369, %v2326
        %2359 = vst.msk [vmem:[%s296 + $0x18] sm:$0xff] %vm369, %v2327
        %2360 = vst.msk [vmem:[%s296 + $0x20] sm:$0xff] %vm369, %v2328
        %2361 = vst.msk [vmem:[%s296 + $0x28] sm:$0xff] %vm369, %v2329
        %2362 = vst.msk [vmem:[%s296 + $0x30] sm:$0xff] %vm369, %v2330
        %2363 = vst.msk [vmem:[%s296 + $0x38] sm:$0xff] %vm369, %v2331
        %2364 = vst.msk [vmem:[%s296 + $0x40] sm:$0xff] %vm369, %v2332
        %2365 = vst.msk [vmem:[%s296 + $0x48] sm:$0xff] %vm369, %v2333
        %2366 = vst.msk [vmem:[%s296 + $0x50] sm:$0xff] %vm369, %v2334
        %2367 = vst.msk [vmem:[%s296 + $0x58] sm:$0xff] %vm369, %v2335
        %2368 = vst.msk [vmem:[%s296 + $0x60] sm:$0xff] %vm369, %v2336
        %2369 = vst.msk [vmem:[%s296 + $0x68] sm:$0xff] %vm369, %v2337
        %2370 = vst.msk [vmem:[%s296 + $0x70] sm:$0xff] %vm369, %v2338
        %2371 = vst.msk [vmem:[%s296 + $0x78] sm:$0xff] %vm369, %v2339
        %2372 = vst.msk [vmem:[%s296 + $0x80] sm:$0xff] %vm369, %v2340
        %2373 = vst.msk [vmem:[%s296 + $0x88] sm:$0xff] %vm369, %v2341
        %2374 = vst.msk [vmem:[%s296 + $0x90] sm:$0xff] %vm369, %v2342
        %2375 = vst.msk [vmem:[%s296 + $0x98] sm:$0xff] %vm369, %v2343
        %2376 = vst.msk [vmem:[%s296 + $0xa0] sm:$0xff] %vm369, %v2344
        %2377 = vst.msk [vmem:[%s296 + $0xa8] sm:$0xff] %vm369, %v2345
        %2378 = vst.msk [vmem:[%s296 + $0xb0] sm:$0xff] %vm369, %v2346
        %2379 = vst.msk [vmem:[%s296 + $0xb8] sm:$0xff] %vm369, %v2347
        %2380 = vst.msk [vmem:[%s296 + $0xc0] sm:$0xff] %vm369, %v2348
        %2381 = vst.msk [vmem:[%s296 + $0xc8] sm:$0xff] %vm369, %v2349
        %2382 = vst.msk [vmem:[%s296 + $0xd0] sm:$0xff] %vm369, %v2350
        %2383 = vst.msk [vmem:[%s296 + $0xd8] sm:$0xff] %vm369, %v2351
        %2384 = vst.msk [vmem:[%s296 + $0xe0] sm:$0xff] %vm369, %v2352
        %2385 = vst.msk [vmem:[%s296 + $0xe8] sm:$0xff] %vm369, %v2353
        %2386 = vst.msk [vmem:[%s296 + $0xf0] sm:$0xff] %vm369, %v2354
        %2387 = vst.msk [vmem:[%s296 + $0xf8] sm:$0xff] %vm369, %v2355
        %s2388 = sand.u32 %s184, 1
        %s2389 = scalar_lea.sflag [#allocation6], %s2388
        %s2390 = sand.u32 %s184, 1
        %s2391 = smul.addr %s2390, 256
        %s2392 = scalar_lea.vmem [#allocation7], %s2391
        // Predicated region
        $region53: #{bottleneck_forward.1} parent=47 // pred_check
          %p2393 = pneg %p194
        $region54: #{bottleneck_forward.1} parent=47 // pred_check_branch
          %2395 = sbr.rel (%p2393) target = $region56
        $region55: #{bottleneck_forward.1} parent=47 // pred_region
          %s2397 = ssub.s32 4096, 4096
          %2398 = vsyncadd %s2389, %s2397
          %s2399 = smul.addr %s24, 32
          %s2400 = smul.addr %s2399, 128
          %s2401 = scalar_lea.hbm %s7, %s2400
          %s2402 = sshll.u32 %s2392, 4
          %s2403 = int_to_ptr.vmem [resolvable:$true] %s2402
          %2408 = dma.vmem_to_hbm [thread:$0]  %s2403, 4096, %s2401, %s2389, 128, 128, 8
        $region56: #{bottleneck_forward.1} parent=47 // pred_fallthru
          _
      $region48: #{bottleneck_forward.1} parent=5 // pred_fallthru
        _
      %p2409 = scmp.le.s32.totalorder 2, %s19
      // Predicated region
      $region57: #{bottleneck_forward.1} parent=5 // pred_check
        %p2410 = pneg %p2409
      $region58: #{bottleneck_forward.1} parent=5 // pred_check_branch
        %2412 = sbr.rel (%p2410) target = $region60
      $region59: #{bottleneck_forward.1} parent=5 // pred_region
        %s2413 = ssub.s32 %s19, 2
        // Predicated region
        $region61: #{bottleneck_forward.1} parent=59 // pred_check
          %p2414 = pneg %p200
        $region62: #{bottleneck_forward.1} parent=59 // pred_check_branch
          %2416 = sbr.rel (%p2414) target = $region64
        $region63: #{bottleneck_forward.1} parent=59 // pred_region
          %s2417 = sand.u32 %s185, 1
          %s2418 = scalar_lea.sflag [#allocation6], %s2417
          %s2419 = sand.u32 %s185, 1
          %s2420 = smul.addr %s2419, 256
          %s2421 = scalar_lea.vmem [#allocation7], %s2420
          %2422 = dma.done %s2418, 4096
        $region64: #{bottleneck_forward.1} parent=59 // pred_fallthru
          _
      $region60: #{bottleneck_forward.1} parent=5 // pred_fallthru
        _
    $region6: #{bottleneck_forward.1} parent=1 // loop_footer
      %s23 = sadd.s32 1, %s19
    $region7: #{bottleneck_forward.1} parent=1 // loop_footer_branch
      %18 = sbr.rel target = $region3
    $region8: #{bottleneck_forward.1} parent=1 // loop_exit
      _
    %2423 = vsyncpa [#allocation5], 1
    %s2424 = scalar_lea.sflag [#allocation5], 1
    %2425 = vsyncpa %s2424, 1
    %2426 = vsyncpa [#allocation6], 1
    %s2427 = scalar_lea.sflag [#allocation6], 1
    %2428 = vsyncpa %s2427, 1

</llo_original>
